<compile_context>
chip_gen: v7x
topology: tpu7x:2x2x1
jax: 0.10.0
libtpu: 0.0.40
codegen_flags: <defaults>
</compile_context>

<pallas_src>
import jax
import jax.numpy as jnp
from jax.experimental import pallas as pl
from jax.experimental.pallas import tpu as pltpu

# ---- module hyper-parameters (from mnist.py) --------------------------------
h1, h2, hw, w1, w2 = 4, 4, 4, 4, 4
o1, o2, o3, o4, o5 = 4, 4, 4, 4, 4
r1, r2, r3, r4 = 8, 8, 8, 8

F_IN = h1 * h2 * hw * w1 * w2     # 1024
F_OUT = o1 * o2 * o3 * o4 * o5    # 1024

# ---- tiling ------------------------------------------------------------------
SUBLANE = 16      # bf16 sublane packing -> pad batch to a multiple of 16
TM_MAX = 512      # batch tile once N grows past a single tile


# ---- kernel ------------------------------------------------------------------
def tt_matmul_kernel(x_ref, w_ref, o_ref):
    # x_ref: (tm, F_IN) bf16   w_ref: (F_IN, tn) bf16   o_ref: (tm, tn) bf16
    o_ref[...] = jnp.dot(
        x_ref[...], w_ref[...], preferred_element_type=jnp.float32
    ).astype(o_ref.dtype)


def tt_first_layer_matmul(x_flat_padded: jax.Array, w_bf16: jax.Array) -> jax.Array:
    """out = x_flat_padded @ w (bf16 operands, f32 accumulate, bf16 out)."""
    np_, k = x_flat_padded.shape
    kw, fout = w_bf16.shape
    assert k == F_IN and kw == F_IN and fout == F_OUT
    assert np_ % SUBLANE == 0

    if np_ <= TM_MAX:
        # Single batch tile; split columns in 2 so both v7x TensorCores each
        # stream half of W.  (On 1-TC v5e/v6e this costs one extra ~0.35us
        # grid step; the dominant cost is the W read either way.)
        tm, tn = np_, 512
    else:
        # Whole W resident; grid iterates only over batch tiles.
        assert np_ % TM_MAX == 0
        tm, tn = TM_MAX, F_OUT

    n_col = fout // tn
    n_row = np_ // tm
    # Column axis OUTER, batch axis INNER: W's block index (0, j) is constant
    # across the inner batch loop, so W stays resident and is only DMA'd once
    # per column tile.  x is the operand re-read per column tile (n_col <= 2).
    grid = (n_col, n_row)

    itemsize = x_flat_padded.dtype.itemsize
    bytes_accessed = (
        np_ * k * itemsize * n_col            # x (re-read per column tile)
        + k * fout * w_bf16.dtype.itemsize    # W (streamed once)
        + np_ * fout * 2                      # bf16 output writeback
    )
    # Double-buffered x, W, out tiles (all bf16) + slack.
    vmem_bytes = 2 * (tm * k + k * tn + tm * tn) * 2 + (4 << 20)

    return pl.pallas_call(
        tt_matmul_kernel,
        out_shape=jax.ShapeDtypeStruct((np_, fout), jnp.bfloat16),
        grid=grid,
        in_specs=[
            pl.BlockSpec((tm, k), lambda j, i: (i, 0)),   # x batch tile
            pl.BlockSpec((k, tn), lambda j, i: (0, j)),   # W column tile (resident)
        ],
        out_specs=pl.BlockSpec((tm, tn), lambda j, i: (i, j)),
        compiler_params=pltpu.CompilerParams(
            dimension_semantics=("parallel", "parallel"),
            vmem_limit_bytes=min(vmem_bytes, 32 * 1024 * 1024),
        ),
        cost_estimate=pl.CostEstimate(
            flops=2 * np_ * k * fout,
            transcendentals=0,
            bytes_accessed=bytes_accessed,
        ),
    )(x_flat_padded, w_bf16)


# ---- parameter setup (deterministic, matches nn.Parameter shapes) ------------
def init_tt_cores(key):
    k1, k2, k3, k4, k5 = jax.random.split(key, 5)
    core1 = 0.8 * jax.random.normal(k1, (h1, r1, o1), jnp.float32)
    core2 = 0.1 * jax.random.normal(k2, (h2, r1, r2, o2), jnp.float32)
    core3 = 0.1 * jax.random.normal(k3, (hw, r2, r3, o3), jnp.float32)
    core4 = 0.1 * jax.random.normal(k4, (w1, r3, r4, o4), jnp.float32)
    core5 = 0.8 * jax.random.normal(k5, (w2, r4, o5), jnp.float32)
    return core1, core2, core3, core4, core5


def merge_tt_cores(core1, core2, core3, core4, core5):
    # Input-independent contraction of TT ranks (i,j,k,l) -> dense W.
    # W[abcde, vwxyz] so that  out[n, vwxyz] = x[n, abcde] @ W.
    # Merged in f32, stored bf16 for the kernel's HBM stream.
    w_full = jnp.einsum(
        "aiv,bijw,cjkx,dkly,elz->abcdevwxyz",
        core1, core2, core3, core4, core5,
    )
    return w_full.reshape(F_IN, F_OUT).astype(jnp.bfloat16)


def init_tt_params(key):
    """Parameter setup: raw cores + cached merged bf16 W (computed ONCE)."""
    cores = init_tt_cores(key)
    w_bf16 = jax.block_until_ready(merge_tt_cores(*cores))
    return cores, w_bf16


# ---- forward wrapper ---------------------------------------------------------
def tt_mnist_first_layer(x_nchw: jax.Array, w_bf16: jax.Array) -> jax.Array:
    n = x_nchw.shape[0]
    x_flat = x_nchw.reshape(n, F_IN).astype(jnp.bfloat16)

    # pad batch: multiple of 16 (bf16 sublanes); multiple of TM_MAX when tiling
    pad_to = SUBLANE if n <= TM_MAX else TM_MAX
    n_pad = -n % pad_to
    x_flat_p = jnp.pad(x_flat, ((0, n_pad), (0, 0)))

    out_p = tt_first_layer_matmul(x_flat_p, w_bf16)
    return out_p[:n]


# ---- reference (pure JAX f32, mirrors the torch.einsum) ----------------------
def tt_mnist_first_layer_ref(x_nchw: jax.Array, cores) -> jax.Array:
    core1, core2, core3, core4, core5 = cores
    n = x_nchw.shape[0]
    xr = x_nchw.reshape(n, h1, h2, hw, w1, w2).astype(jnp.float32)
    res = jnp.einsum(
        "nabcde,aiv,bijw,cjkx,dkly,elz->nvwxyz",
        xr, core1, core2, core3, core4, core5,
    )
    return res.reshape(n, F_OUT)


if __name__ == "__main__":
    key = jax.random.PRNGKey(0)
    k_params, k_x = jax.random.split(key)

    # Parameter setup: cores + cached merged W (hoisted out of the forward).
    cores, w_bf16 = init_tt_params(k_params)

    # NCHW input: batch=2, channels=1, 32x32 image -> 1024 features/sample
    x = jax.random.normal(k_x, (2, 1, 32, 32), jnp.float32)

    out = jax.block_until_ready(tt_mnist_first_layer(x, w_bf16))
    ref = jax.block_until_ready(tt_mnist_first_layer_ref(x, cores))

    assert out.shape == (2, F_OUT), out.shape
    # bf16 operands + bf16 output vs f32 reference: check error relative to
    # the output scale (deliberate precision trade-off, documented).
    err = float(jnp.max(jnp.abs(out.astype(jnp.float32) - ref)))
    scale = float(jnp.max(jnp.abs(ref)))
    assert err <= 3e-2 * scale, (err, scale)
    print("KERNEL_OK")
</pallas_src>

<mosaic_0001>
module attributes {stable_mosaic.version = 11 : i64} {
  func.func @tt_matmul_kernel(%arg0: i32, %arg1: i32, %arg2: memref<16x1024xbf16, #tpu.memory_space<vmem>>, %arg3: memref<1024x512xbf16, #tpu.memory_space<vmem>>, %arg4: memref<16x512xbf16, #tpu.memory_space<vmem>>) attributes {dimension_semantics = [#tpu.dimension_semantics<parallel>, #tpu.dimension_semantics<parallel>], iteration_bounds = array<i64: 2, 1>, scalar_prefetch = 0 : i64, scratch_operands = 0 : i64, tpu.core_type = #tpu.core_type<tc>, window_params = [{transform_indices = @transform_0, window_bounds = array<i64: 16, 1024>}, {transform_indices = @transform_1, window_bounds = array<i64: 1024, 512>}, {transform_indices = @transform_2, window_bounds = array<i64: 16, 512>}]} {
    %c0 = arith.constant 0 : index
    %c0_0 = arith.constant 0 : index
    %0 = vector.load %arg2[%c0, %c0_0] : memref<16x1024xbf16, #tpu.memory_space<vmem>>, vector<16x1024xbf16>
    %c0_1 = arith.constant 0 : index
    %c0_2 = arith.constant 0 : index
    %1 = vector.load %arg3[%c0_1, %c0_2] : memref<1024x512xbf16, #tpu.memory_space<vmem>>, vector<1024x512xbf16>
    %cst = arith.constant dense<0.000000e+00> : vector<16x512xf32>
    %2 = tpu.matmul %0, %1, %cst {dimension_numbers = #tpu.dot_dimension_numbers<[1], [0], [0], [1], [0, 0, 1, 1], [], []>} : vector<16x1024xbf16>, vector<1024x512xbf16>, vector<16x512xf32> -> vector<16x512xf32>
    %3 = arith.truncf %2 : vector<16x512xf32> to vector<16x512xbf16>
    %c0_3 = arith.constant 0 : index
    %c0_4 = arith.constant 0 : index
    %4 = vector.load %arg4[%c0_3, %c0_4] : memref<16x512xbf16, #tpu.memory_space<vmem>>, vector<16x512xbf16>
    tpu.vector_store %arg4[%c0_3, %c0_4], %3 {strides = array<i32>} : memref<16x512xbf16, #tpu.memory_space<vmem>>, vector<16x512xbf16>,
    return
  }
  func.func @transform_0(%arg0: i32, %arg1: i32) -> (i32, i32) {
    %c0_i32 = arith.constant 0 : i32
    %c0_i32_0 = arith.constant 0 : i32
    return %arg1, %c0_i32 : i32, i32
  }
  func.func @transform_1(%arg0: i32, %arg1: i32) -> (i32, i32) {
    %c0_i32 = arith.constant 0 : i32
    %c0_i32_0 = arith.constant 0 : i32
    return %c0_i32, %arg0 : i32, i32
  }
  func.func @transform_2(%arg0: i32, %arg1: i32) -> (i32, i32) {
    %c0_i32 = arith.constant 0 : i32
    return %arg1, %arg0 : i32, i32
  }
}

</mosaic_0001>

<llo_original>
// kernel: tpu_custom_call.1
$region0: #{tpu_custom_call.1}
  #allocation0 [shape = 'u32[]', space=smem, size = 0x4, offset = 0x4, fixed_abs, tag = 'smem constant byte address 0x4 - core index']
  #allocation1 [shape = 'u32[144,128]{1,0:T(1,128)}', space=vmem, size = 0x12000, scoped, tag = 'internal scratch']
  %s0 = inlined_call_operand.hbm [shape: bf16[16,1024], index: 0, kind: input, shape index: {}]
  %s1 = inlined_call_operand.hbm [shape: bf16[1024,1024], index: 1, kind: input, shape index: {}]
  %s2 = inlined_call_operand.hbm [shape: bf16[16,1024], index: 2, kind: output, shape index: {}]
  %s3 = sld [smem:[#allocation0]]
  $region49: #{tpu_custom_call.1} parent=0
    _
  %s5 = ssub.s32 1, %s3
  %s6 = scalar_select 0, %s5, %s3
  $region1: #{tpu_custom_call.1} parent=0
    #allocation2 [shape = 'u8[32768]{0}', space=vmem, size = 0x8000, scoped, tag = 'input window, operand 0, single buffered']
    #allocation3 [shape = 's32[2]{0}', space=sflag, size = 0x8, scoped, tag = 'scoped memory for tpu_custom_call.1']
    #allocation4 [shape = 's32[2]{0}', space=sflag, size = 0x8, scoped, tag = 'scoped memory for tpu_custom_call.1']
    #allocation5 [shape = 'u8[2097152]{0}', space=vmem, size = 0x200000, scoped, tag = 'input window, operand 1']
    #allocation6 [shape = 's32[2]{0}', space=sflag, size = 0x8, scoped, tag = 'scoped memory for tpu_custom_call.1']
    #allocation7 [shape = 'u8[32768]{0}', space=vmem, size = 0x8000, scoped, tag = 'output window, operand 0']
    %7 = vsyncpa [#allocation3], 0
    %8 = vsyncpa [#allocation6], 0
    %s9 = scalar_lea.sflag [#allocation6], 1
    %10 = vsyncpa %s9, 0
    %11 = vsyncpa [#allocation4], 0
    %s12 = scalar_lea.sflag [#allocation4], 1
    %13 = vsyncpa %s12, 0
    loop: start=0, step=1, limit=4
    $region2: #{tpu_custom_call.1} parent=1 // loop_pre_header
      _
    $region3: #{tpu_custom_call.1} parent=1 // loop_header
      %s15 = sphi 0, %s19
      %p16 = scmp.ge.s32.totalorder %s15, 4
      %s22 = sphi 0, %s34
      %s23 = sphi 0, %s30
      %s24 = sphi 0, %s22
      %s25 = sphi 0, %s23
      %s26 = sphi 0, %s24
      %s27 = sphi 0, %s25
      %s37 = sphi 0, %s39
      %s40 = sphi 0, %s37
      %s41 = sphi 0, %s40
      %s57 = sphi 0, %s41
      %s63 = sphi 0, %s65
      %s66 = sphi 0, %s63
      %s67 = sphi 0, %s66
      %s83 = sphi 0, %s67
      %s91 = sphi 0, %s93
      %s94 = sphi 0, %s91
      %s95 = sphi 0, %s94
      %s111 = sphi 0, %s95
    $region4: #{tpu_custom_call.1} parent=1 // loop_header_branch
      %18 = sbr.rel (%p16) target = $region8
    $region5: #{tpu_custom_call.1} parent=1 // loop_body
      %s20 = ssub.s32 %s15, 1
      %s21 = ssub.s32 %s15, 2
      %s28 = sadd.s32 1, %s23
      %p29 = scmp.ge.s32.totalorder %s28, 1
      %s30 = scalar_select %p29, 0, %s28
      %s31 = sadd.s32 1, %s22
      %s32 = scalar_select %p29, %s31, %s22
      %p33 = scmp.ge.s32.totalorder %s32, 2
      %s34 = scalar_select %p33, 0, %s32
      %s35 = ssub.s32 %s23, %s30
      %p36 = scmp.eq.s32.totalorder %s35, 0
      %s38 = sadd.s32 %s37, 1
      %s39 = scalar_select %p36, %s37, %s38
      %p42 = pneg %p36
      %p43 = scmp.eq.s32.totalorder %s15, 1
      %p44 = por %p42, %p43
      %p45 = scmp.ne.s32.totalorder %s37, %s40
      %p46 = scmp.eq.s32.totalorder %s15, 0
      %p47 = por %p45, %p46
      %p48 = scmp.ne.s32.totalorder %s37, %s40
      %p49 = scmp.eq.s32.totalorder %s20, 1
      %p50 = por %p48, %p49
      %p51 = scmp.ne.s32.totalorder %s40, %s41
      %p52 = scmp.eq.s32.totalorder %s20, 0
      %p53 = por %p51, %p52
      %p54 = scmp.ne.s32.totalorder %s40, %s41
      %p55 = scmp.eq.s32.totalorder %s21, 1
      %p56 = por %p54, %p55
      %p58 = scmp.ne.s32.totalorder %s41, %s57
      %p59 = scmp.eq.s32.totalorder %s21, 0
      %p60 = por %p58, %p59
      %s61 = ssub.s32 %s22, %s34
      %p62 = scmp.eq.s32.totalorder %s61, 0
      %s64 = sadd.s32 %s63, 1
      %s65 = scalar_select %p62, %s63, %s64
      %p68 = pneg %p62
      %p69 = scmp.eq.s32.totalorder %s15, 1
      %p70 = por %p68, %p69
      %p71 = scmp.ne.s32.totalorder %s63, %s66
      %p72 = scmp.eq.s32.totalorder %s15, 0
      %p73 = por %p71, %p72
      %p74 = scmp.ne.s32.totalorder %s63, %s66
      %p75 = scmp.eq.s32.totalorder %s20, 1
      %p76 = por %p74, %p75
      %p77 = scmp.ne.s32.totalorder %s66, %s67
      %p78 = scmp.eq.s32.totalorder %s20, 0
      %p79 = por %p77, %p78
      %p80 = scmp.ne.s32.totalorder %s66, %s67
      %p81 = scmp.eq.s32.totalorder %s21, 1
      %p82 = por %p80, %p81
      %p84 = scmp.ne.s32.totalorder %s67, %s83
      %p85 = scmp.eq.s32.totalorder %s21, 0
      %p86 = por %p84, %p85
      %s87 = ssub.s32 %s23, %s30
      %s88 = ssub.s32 %s22, %s34
      %s89 = sor.u32 %s87, %s88
      %p90 = scmp.eq.s32.totalorder %s89, 0
      %s92 = sadd.s32 %s91, 1
      %s93 = scalar_select %p90, %s91, %s92
      %p96 = pneg %p90
      %p97 = scmp.eq.s32.totalorder %s15, 1
      %p98 = por %p96, %p97
      %p99 = scmp.ne.s32.totalorder %s91, %s94
      %p100 = scmp.eq.s32.totalorder %s15, 0
      %p101 = por %p99, %p100
      %p102 = scmp.ne.s32.totalorder %s91, %s94
      %p103 = scmp.eq.s32.totalorder %s20, 1
      %p104 = por %p102, %p103
      %p105 = scmp.ne.s32.totalorder %s94, %s95
      %p106 = scmp.eq.s32.totalorder %s20, 0
      %p107 = por %p105, %p106
      %p108 = scmp.ne.s32.totalorder %s94, %s95
      %p109 = scmp.eq.s32.totalorder %s21, 1
      %p110 = por %p108, %p109
      %p112 = scmp.ne.s32.totalorder %s95, %s111
      %p113 = scmp.eq.s32.totalorder %s21, 0
      %p114 = por %p112, %p113
      %p115 = scmp.le.s32.totalorder 1, %s15
      %p116 = scmp.lt.s32.totalorder %s15, 3
      %p117 = pnand %p115, %p116
      %p118 = pneg %p117
      // Predicated region
      $region9: #{tpu_custom_call.1} parent=5 // pred_check
        _
      $region10: #{tpu_custom_call.1} parent=5 // pred_check_branch
        %120 = sbr.rel (%p117) target = $region12
      $region11: #{tpu_custom_call.1} parent=5 // pred_region
        %s121 = ssub.s32 %s15, 1
        // Predicated region
        $region13: #{tpu_custom_call.1} parent=11 // pred_check
          %p122 = pneg %p53
        $region14: #{tpu_custom_call.1} parent=11 // pred_check_branch
          %124 = sbr.rel (%p122) target = $region16
        $region15: #{tpu_custom_call.1} parent=11 // pred_region
          %s125 = smul.u32 2, %s25
          %s127 = ssub.s32 1024, 1024
          %128 = vsyncadd [#allocation3], %s127
          %s129 = smul.addr %s125, 8
          %s130 = smul.addr %s129, 64
          %s131 = scalar_lea.hbm %s0, %s130
          %s132 = sshll.u32 [#allocation2], 4
          %s133 = int_to_ptr.vmem [resolvable:$true] %s132
          %138 = dma.hbm_to_vmem [thread:$0]  %s131, 1024, %s133, [#allocation3], 512, 512, 32
        $region16: #{tpu_custom_call.1} parent=11 // pred_fallthru
          _
      $region12: #{tpu_custom_call.1} parent=5 // pred_fallthru
        _
      %p139 = scmp.lt.s32.totalorder %s15, 2
      // Predicated region
      $region17: #{tpu_custom_call.1} parent=5 // pred_check
        %p140 = pneg %p139
      $region18: #{tpu_custom_call.1} parent=5 // pred_check_branch
        %142 = sbr.rel (%p140) target = $region20
      $region19: #{tpu_custom_call.1} parent=5 // pred_region
        // Predicated region
        $region21: #{tpu_custom_call.1} parent=19 // pred_check
          %p143 = pneg %p73
        $region22: #{tpu_custom_call.1} parent=19 // pred_check_branch
          %145 = sbr.rel (%p143) target = $region24
        $region23: #{tpu_custom_call.1} parent=19 // pred_region
          %s146 = sand.u32 %s63, 1
          %s147 = scalar_lea.sflag [#allocation6], %s146
          %s148 = sand.u32 %s63, 1
          %s149 = smul.addr %s148, 2048
          %s150 = scalar_lea.vmem [#allocation5], %s149
          %s151 = smul.u32 4, %s22
          %s153 = ssub.s32 32768, 32768
          %154 = vsyncadd %s147, %s153
          %s155 = smul.addr %s151, 64
          %s156 = scalar_lea.hbm %s1, %s155
          %s157 = sshll.u32 %s150, 4
          %s158 = int_to_ptr.vmem [resolvable:$true] %s157
          %163 = dma.hbm_to_vmem [thread:$0]  %s156, 32768, %s158, %s147, 512, 256, 16
        $region24: #{tpu_custom_call.1} parent=19 // pred_fallthru
          _
      $region20: #{tpu_custom_call.1} parent=5 // pred_fallthru
        _
      %p164 = scmp.le.s32.totalorder 1, %s15
      %p165 = scmp.lt.s32.totalorder %s15, 3
      %p166 = pnand %p164, %p165
      %p167 = pneg %p166
      // Predicated region
      $region25: #{tpu_custom_call.1} parent=5 // pred_check
        _
      $region26: #{tpu_custom_call.1} parent=5 // pred_check_branch
        %169 = sbr.rel (%p166) target = $region28
      $region27: #{tpu_custom_call.1} parent=5 // pred_region
        %s170 = ssub.s32 %s15, 1
        // Predicated region
        $region29: #{tpu_custom_call.1} parent=27 // pred_check
          %p171 = pneg %p53
        $region30: #{tpu_custom_call.1} parent=27 // pred_check_branch
          %173 = sbr.rel (%p171) target = $region32
        $region31: #{tpu_custom_call.1} parent=27 // pred_region
          %174 = dma.done [#allocation3], 1024
        $region32: #{tpu_custom_call.1} parent=27 // pred_fallthru
          _
        %s175 = sand.u32 %s66, 1
        %s176 = scalar_lea.sflag [#allocation6], %s175
        %s177 = sand.u32 %s66, 1
        %s178 = smul.addr %s177, 2048
        %s179 = scalar_lea.vmem [#allocation5], %s178
        // Predicated region
        $region33: #{tpu_custom_call.1} parent=27 // pred_check
          %p180 = pneg %p79
        $region34: #{tpu_custom_call.1} parent=27 // pred_check_branch
          %182 = sbr.rel (%p180) target = $region36
        $region35: #{tpu_custom_call.1} parent=27 // pred_region
          %183 = dma.done %s176, 32768
        $region36: #{tpu_custom_call.1} parent=27 // pred_fallthru
          _
        %p184 = pneg %p53
        %p185 = pneg %p50
        %s186 = sand.u32 %s66, 1
        %s187 = scalar_lea.sflag [#allocation6], %s186
        %s188 = sand.u32 %s66, 1
        %s189 = smul.addr %s188, 2048
        %s190 = scalar_lea.vmem [#allocation5], %s189
        %p191 = pneg %p79
        %p192 = pneg %p76
        %p193 = pneg %p107
        %p194 = pneg %p104
        %s195 = sand.u32 %s94, 1
        %s196 = scalar_lea.sflag [#allocation4], %s195
        %s197 = sand.u32 %s94, 1
        %s198 = smul.addr %s197, 32
        %s199 = scalar_lea.vmem [#allocation7], %s198
        %s200 = smul.u32 2, %s25
        %s201 = smul.u32 4, %s24
        %s202 = smul.u32 2, %s25
        %s203 = smul.u32 4, %s24
        %v204 = vld [vmem:[#allocation2] sm:$0xff]
        %v205 = vld [vmem:[#allocation2 + $0x8] sm:$0xff]
        %v206 = vld [vmem:[#allocation2 + $0x10] sm:$0xff]
        %v207 = vld [vmem:[#allocation2 + $0x18] sm:$0xff]
        %v208 = vld [vmem:[#allocation2 + $0x20] sm:$0xff]
        %v209 = vld [vmem:[#allocation2 + $0x28] sm:$0xff]
        %v210 = vld [vmem:[#allocation2 + $0x30] sm:$0xff]
        %v211 = vld [vmem:[#allocation2 + $0x38] sm:$0xff]
        %v212 = vld [vmem:[%s179] sm:$0xff]
        %v213 = vld [vmem:[%s179 + $0x8] sm:$0xff]
        %v214 = vld [vmem:[%s179 + $0x10] sm:$0xff]
        %v215 = vld [vmem:[%s179 + $0x18] sm:$0xff]
        %v216 = vld [vmem:[%s179 + $0x20] sm:$0xff]
        %v217 = vld [vmem:[%s179 + $0x28] sm:$0xff]
        %v218 = vld [vmem:[%s179 + $0x30] sm:$0xff]
        %v219 = vld [vmem:[%s179 + $0x38] sm:$0xff]
        %v220 = vld [vmem:[%s179 + $0x40] sm:$0xff]
        %v221 = vld [vmem:[%s179 + $0x48] sm:$0xff]
        %v222 = vld [vmem:[%s179 + $0x50] sm:$0xff]
        %v223 = vld [vmem:[%s179 + $0x58] sm:$0xff]
        %v224 = vld [vmem:[%s179 + $0x60] sm:$0xff]
        %v225 = vld [vmem:[%s179 + $0x68] sm:$0xff]
        %v226 = vld [vmem:[%s179 + $0x70] sm:$0xff]
        %v227 = vld [vmem:[%s179 + $0x78] sm:$0xff]
        %v228 = vld [vmem:[%s179 + $0x80] sm:$0xff]
        %v229 = vld [vmem:[%s179 + $0x88] sm:$0xff]
        %v230 = vld [vmem:[%s179 + $0x90] sm:$0xff]
        %v231 = vld [vmem:[%s179 + $0x98] sm:$0xff]
        %v232 = vld [vmem:[%s179 + $0xa0] sm:$0xff]
        %v233 = vld [vmem:[%s179 + $0xa8] sm:$0xff]
        %v234 = vld [vmem:[%s179 + $0xb0] sm:$0xff]
        %v235 = vld [vmem:[%s179 + $0xb8] sm:$0xff]
        %v236 = vld [vmem:[%s179 + $0xc0] sm:$0xff]
        %v237 = vld [vmem:[%s179 + $0xc8] sm:$0xff]
        %v238 = vld [vmem:[%s179 + $0xd0] sm:$0xff]
        %v239 = vld [vmem:[%s179 + $0xd8] sm:$0xff]
        %v240 = vld [vmem:[%s179 + $0xe0] sm:$0xff]
        %v241 = vld [vmem:[%s179 + $0xe8] sm:$0xff]
        %v242 = vld [vmem:[%s179 + $0xf0] sm:$0xff]
        %v243 = vld [vmem:[%s179 + $0xf8] sm:$0xff]
        %v244 = vld [vmem:[%s179 + $0x100] sm:$0xff]
        %v245 = vld [vmem:[%s179 + $0x108] sm:$0xff]
        %v246 = vld [vmem:[%s179 + $0x110] sm:$0xff]
        %v247 = vld [vmem:[%s179 + $0x118] sm:$0xff]
        %v248 = vld [vmem:[%s179 + $0x120] sm:$0xff]
        %v249 = vld [vmem:[%s179 + $0x128] sm:$0xff]
        %v250 = vld [vmem:[%s179 + $0x130] sm:$0xff]
        %v251 = vld [vmem:[%s179 + $0x138] sm:$0xff]
        %v252 = vld [vmem:[%s179 + $0x140] sm:$0xff]
        %v253 = vld [vmem:[%s179 + $0x148] sm:$0xff]
        %v254 = vld [vmem:[%s179 + $0x150] sm:$0xff]
        %v255 = vld [vmem:[%s179 + $0x158] sm:$0xff]
        %v256 = vld [vmem:[%s179 + $0x160] sm:$0xff]
        %v257 = vld [vmem:[%s179 + $0x168] sm:$0xff]
        %v258 = vld [vmem:[%s179 + $0x170] sm:$0xff]
        %v259 = vld [vmem:[%s179 + $0x178] sm:$0xff]
        %v260 = vld [vmem:[%s179 + $0x180] sm:$0xff]
        %v261 = vld [vmem:[%s179 + $0x188] sm:$0xff]
        %v262 = vld [vmem:[%s179 + $0x190] sm:$0xff]
        %v263 = vld [vmem:[%s179 + $0x198] sm:$0xff]
        %v264 = vld [vmem:[%s179 + $0x1a0] sm:$0xff]
        %v265 = vld [vmem:[%s179 + $0x1a8] sm:$0xff]
        %v266 = vld [vmem:[%s179 + $0x1b0] sm:$0xff]
        %v267 = vld [vmem:[%s179 + $0x1b8] sm:$0xff]
        %v268 = vld [vmem:[%s179 + $0x1c0] sm:$0xff]
        %v269 = vld [vmem:[%s179 + $0x1c8] sm:$0xff]
        %v270 = vld [vmem:[%s179 + $0x1d0] sm:$0xff]
        %v271 = vld [vmem:[%s179 + $0x1d8] sm:$0xff]
        %v272 = vld [vmem:[%s179 + $0x1e0] sm:$0xff]
        %v273 = vld [vmem:[%s179 + $0x1e8] sm:$0xff]
        %v274 = vld [vmem:[%s179 + $0x1f0] sm:$0xff]
        %v275 = vld [vmem:[%s179 + $0x1f8] sm:$0xff]
        %v276 = vld [vmem:[%s179 + $0x200] sm:$0xff]
        %v277 = vld [vmem:[%s179 + $0x208] sm:$0xff]
        %v278 = vld [vmem:[%s179 + $0x210] sm:$0xff]
        %v279 = vld [vmem:[%s179 + $0x218] sm:$0xff]
        %v280 = vld [vmem:[%s179 + $0x220] sm:$0xff]
        %v281 = vld [vmem:[%s179 + $0x228] sm:$0xff]
        %v282 = vld [vmem:[%s179 + $0x230] sm:$0xff]
        %v283 = vld [vmem:[%s179 + $0x238] sm:$0xff]
        %v284 = vld [vmem:[%s179 + $0x240] sm:$0xff]
        %v285 = vld [vmem:[%s179 + $0x248] sm:$0xff]
        %v286 = vld [vmem:[%s179 + $0x250] sm:$0xff]
        %v287 = vld [vmem:[%s179 + $0x258] sm:$0xff]
        %v288 = vld [vmem:[%s179 + $0x260] sm:$0xff]
        %v289 = vld [vmem:[%s179 + $0x268] sm:$0xff]
        %v290 = vld [vmem:[%s179 + $0x270] sm:$0xff]
        %v291 = vld [vmem:[%s179 + $0x278] sm:$0xff]
        %v292 = vld [vmem:[%s179 + $0x280] sm:$0xff]
        %v293 = vld [vmem:[%s179 + $0x288] sm:$0xff]
        %v294 = vld [vmem:[%s179 + $0x290] sm:$0xff]
        %v295 = vld [vmem:[%s179 + $0x298] sm:$0xff]
        %v296 = vld [vmem:[%s179 + $0x2a0] sm:$0xff]
        %v297 = vld [vmem:[%s179 + $0x2a8] sm:$0xff]
        %v298 = vld [vmem:[%s179 + $0x2b0] sm:$0xff]
        %v299 = vld [vmem:[%s179 + $0x2b8] sm:$0xff]
        %v300 = vld [vmem:[%s179 + $0x2c0] sm:$0xff]
        %v301 = vld [vmem:[%s179 + $0x2c8] sm:$0xff]
        %v302 = vld [vmem:[%s179 + $0x2d0] sm:$0xff]
        %v303 = vld [vmem:[%s179 + $0x2d8] sm:$0xff]
        %v304 = vld [vmem:[%s179 + $0x2e0] sm:$0xff]
        %v305 = vld [vmem:[%s179 + $0x2e8] sm:$0xff]
        %v306 = vld [vmem:[%s179 + $0x2f0] sm:$0xff]
        %v307 = vld [vmem:[%s179 + $0x2f8] sm:$0xff]
        %v308 = vld [vmem:[%s179 + $0x300] sm:$0xff]
        %v309 = vld [vmem:[%s179 + $0x308] sm:$0xff]
        %v310 = vld [vmem:[%s179 + $0x310] sm:$0xff]
        %v311 = vld [vmem:[%s179 + $0x318] sm:$0xff]
        %v312 = vld [vmem:[%s179 + $0x320] sm:$0xff]
        %v313 = vld [vmem:[%s179 + $0x328] sm:$0xff]
        %v314 = vld [vmem:[%s179 + $0x330] sm:$0xff]
        %v315 = vld [vmem:[%s179 + $0x338] sm:$0xff]
        %v316 = vld [vmem:[%s179 + $0x340] sm:$0xff]
        %v317 = vld [vmem:[%s179 + $0x348] sm:$0xff]
        %v318 = vld [vmem:[%s179 + $0x350] sm:$0xff]
        %v319 = vld [vmem:[%s179 + $0x358] sm:$0xff]
        %v320 = vld [vmem:[%s179 + $0x360] sm:$0xff]
        %v321 = vld [vmem:[%s179 + $0x368] sm:$0xff]
        %v322 = vld [vmem:[%s179 + $0x370] sm:$0xff]
        %v323 = vld [vmem:[%s179 + $0x378] sm:$0xff]
        %v324 = vld [vmem:[%s179 + $0x380] sm:$0xff]
        %v325 = vld [vmem:[%s179 + $0x388] sm:$0xff]
        %v326 = vld [vmem:[%s179 + $0x390] sm:$0xff]
        %v327 = vld [vmem:[%s179 + $0x398] sm:$0xff]
        %v328 = vld [vmem:[%s179 + $0x3a0] sm:$0xff]
        %v329 = vld [vmem:[%s179 + $0x3a8] sm:$0xff]
        %v330 = vld [vmem:[%s179 + $0x3b0] sm:$0xff]
        %v331 = vld [vmem:[%s179 + $0x3b8] sm:$0xff]
        %v332 = vld [vmem:[%s179 + $0x3c0] sm:$0xff]
        %v333 = vld [vmem:[%s179 + $0x3c8] sm:$0xff]
        %v334 = vld [vmem:[%s179 + $0x3d0] sm:$0xff]
        %v335 = vld [vmem:[%s179 + $0x3d8] sm:$0xff]
        %v336 = vld [vmem:[%s179 + $0x3e0] sm:$0xff]
        %v337 = vld [vmem:[%s179 + $0x3e8] sm:$0xff]
        %v338 = vld [vmem:[%s179 + $0x3f0] sm:$0xff]
        %v339 = vld [vmem:[%s179 + $0x3f8] sm:$0xff]
        %v340 = vld [vmem:[%s179 + $0x400] sm:$0xff]
        %v341 = vld [vmem:[%s179 + $0x408] sm:$0xff]
        %v342 = vld [vmem:[%s179 + $0x410] sm:$0xff]
        %v343 = vld [vmem:[%s179 + $0x418] sm:$0xff]
        %v344 = vld [vmem:[%s179 + $0x420] sm:$0xff]
        %v345 = vld [vmem:[%s179 + $0x428] sm:$0xff]
        %v346 = vld [vmem:[%s179 + $0x430] sm:$0xff]
        %v347 = vld [vmem:[%s179 + $0x438] sm:$0xff]
        %v348 = vld [vmem:[%s179 + $0x440] sm:$0xff]
        %v349 = vld [vmem:[%s179 + $0x448] sm:$0xff]
        %v350 = vld [vmem:[%s179 + $0x450] sm:$0xff]
        %v351 = vld [vmem:[%s179 + $0x458] sm:$0xff]
        %v352 = vld [vmem:[%s179 + $0x460] sm:$0xff]
        %v353 = vld [vmem:[%s179 + $0x468] sm:$0xff]
        %v354 = vld [vmem:[%s179 + $0x470] sm:$0xff]
        %v355 = vld [vmem:[%s179 + $0x478] sm:$0xff]
        %v356 = vld [vmem:[%s179 + $0x480] sm:$0xff]
        %v357 = vld [vmem:[%s179 + $0x488] sm:$0xff]
        %v358 = vld [vmem:[%s179 + $0x490] sm:$0xff]
        %v359 = vld [vmem:[%s179 + $0x498] sm:$0xff]
        %v360 = vld [vmem:[%s179 + $0x4a0] sm:$0xff]
        %v361 = vld [vmem:[%s179 + $0x4a8] sm:$0xff]
        %v362 = vld [vmem:[%s179 + $0x4b0] sm:$0xff]
        %v363 = vld [vmem:[%s179 + $0x4b8] sm:$0xff]
        %v364 = vld [vmem:[%s179 + $0x4c0] sm:$0xff]
        %v365 = vld [vmem:[%s179 + $0x4c8] sm:$0xff]
        %v366 = vld [vmem:[%s179 + $0x4d0] sm:$0xff]
        %v367 = vld [vmem:[%s179 + $0x4d8] sm:$0xff]
        %v368 = vld [vmem:[%s179 + $0x4e0] sm:$0xff]
        %v369 = vld [vmem:[%s179 + $0x4e8] sm:$0xff]
        %v370 = vld [vmem:[%s179 + $0x4f0] sm:$0xff]
        %v371 = vld [vmem:[%s179 + $0x4f8] sm:$0xff]
        %v372 = vld [vmem:[%s179 + $0x500] sm:$0xff]
        %v373 = vld [vmem:[%s179 + $0x508] sm:$0xff]
        %v374 = vld [vmem:[%s179 + $0x510] sm:$0xff]
        %v375 = vld [vmem:[%s179 + $0x518] sm:$0xff]
        %v376 = vld [vmem:[%s179 + $0x520] sm:$0xff]
        %v377 = vld [vmem:[%s179 + $0x528] sm:$0xff]
        %v378 = vld [vmem:[%s179 + $0x530] sm:$0xff]
        %v379 = vld [vmem:[%s179 + $0x538] sm:$0xff]
        %v380 = vld [vmem:[%s179 + $0x540] sm:$0xff]
        %v381 = vld [vmem:[%s179 + $0x548] sm:$0xff]
        %v382 = vld [vmem:[%s179 + $0x550] sm:$0xff]
        %v383 = vld [vmem:[%s179 + $0x558] sm:$0xff]
        %v384 = vld [vmem:[%s179 + $0x560] sm:$0xff]
        %v385 = vld [vmem:[%s179 + $0x568] sm:$0xff]
        %v386 = vld [vmem:[%s179 + $0x570] sm:$0xff]
        %v387 = vld [vmem:[%s179 + $0x578] sm:$0xff]
        %v388 = vld [vmem:[%s179 + $0x580] sm:$0xff]
        %v389 = vld [vmem:[%s179 + $0x588] sm:$0xff]
        %v390 = vld [vmem:[%s179 + $0x590] sm:$0xff]
        %v391 = vld [vmem:[%s179 + $0x598] sm:$0xff]
        %v392 = vld [vmem:[%s179 + $0x5a0] sm:$0xff]
        %v393 = vld [vmem:[%s179 + $0x5a8] sm:$0xff]
        %v394 = vld [vmem:[%s179 + $0x5b0] sm:$0xff]
        %v395 = vld [vmem:[%s179 + $0x5b8] sm:$0xff]
        %v396 = vld [vmem:[%s179 + $0x5c0] sm:$0xff]
        %v397 = vld [vmem:[%s179 + $0x5c8] sm:$0xff]
        %v398 = vld [vmem:[%s179 + $0x5d0] sm:$0xff]
        %v399 = vld [vmem:[%s179 + $0x5d8] sm:$0xff]
        %v400 = vld [vmem:[%s179 + $0x5e0] sm:$0xff]
        %v401 = vld [vmem:[%s179 + $0x5e8] sm:$0xff]
        %v402 = vld [vmem:[%s179 + $0x5f0] sm:$0xff]
        %v403 = vld [vmem:[%s179 + $0x5f8] sm:$0xff]
        %v404 = vld [vmem:[%s179 + $0x600] sm:$0xff]
        %v405 = vld [vmem:[%s179 + $0x608] sm:$0xff]
        %v406 = vld [vmem:[%s179 + $0x610] sm:$0xff]
        %v407 = vld [vmem:[%s179 + $0x618] sm:$0xff]
        %v408 = vld [vmem:[%s179 + $0x620] sm:$0xff]
        %v409 = vld [vmem:[%s179 + $0x628] sm:$0xff]
        %v410 = vld [vmem:[%s179 + $0x630] sm:$0xff]
        %v411 = vld [vmem:[%s179 + $0x638] sm:$0xff]
        %v412 = vld [vmem:[%s179 + $0x640] sm:$0xff]
        %v413 = vld [vmem:[%s179 + $0x648] sm:$0xff]
        %v414 = vld [vmem:[%s179 + $0x650] sm:$0xff]
        %v415 = vld [vmem:[%s179 + $0x658] sm:$0xff]
        %v416 = vld [vmem:[%s179 + $0x660] sm:$0xff]
        %v417 = vld [vmem:[%s179 + $0x668] sm:$0xff]
        %v418 = vld [vmem:[%s179 + $0x670] sm:$0xff]
        %v419 = vld [vmem:[%s179 + $0x678] sm:$0xff]
        %v420 = vld [vmem:[%s179 + $0x680] sm:$0xff]
        %v421 = vld [vmem:[%s179 + $0x688] sm:$0xff]
        %v422 = vld [vmem:[%s179 + $0x690] sm:$0xff]
        %v423 = vld [vmem:[%s179 + $0x698] sm:$0xff]
        %v424 = vld [vmem:[%s179 + $0x6a0] sm:$0xff]
        %v425 = vld [vmem:[%s179 + $0x6a8] sm:$0xff]
        %v426 = vld [vmem:[%s179 + $0x6b0] sm:$0xff]
        %v427 = vld [vmem:[%s179 + $0x6b8] sm:$0xff]
        %v428 = vld [vmem:[%s179 + $0x6c0] sm:$0xff]
        %v429 = vld [vmem:[%s179 + $0x6c8] sm:$0xff]
        %v430 = vld [vmem:[%s179 + $0x6d0] sm:$0xff]
        %v431 = vld [vmem:[%s179 + $0x6d8] sm:$0xff]
        %v432 = vld [vmem:[%s179 + $0x6e0] sm:$0xff]
        %v433 = vld [vmem:[%s179 + $0x6e8] sm:$0xff]
        %v434 = vld [vmem:[%s179 + $0x6f0] sm:$0xff]
        %v435 = vld [vmem:[%s179 + $0x6f8] sm:$0xff]
        %v436 = vld [vmem:[%s179 + $0x700] sm:$0xff]
        %v437 = vld [vmem:[%s179 + $0x708] sm:$0xff]
        %v438 = vld [vmem:[%s179 + $0x710] sm:$0xff]
        %v439 = vld [vmem:[%s179 + $0x718] sm:$0xff]
        %v440 = vld [vmem:[%s179 + $0x720] sm:$0xff]
        %v441 = vld [vmem:[%s179 + $0x728] sm:$0xff]
        %v442 = vld [vmem:[%s179 + $0x730] sm:$0xff]
        %v443 = vld [vmem:[%s179 + $0x738] sm:$0xff]
        %v444 = vld [vmem:[%s179 + $0x740] sm:$0xff]
        %v445 = vld [vmem:[%s179 + $0x748] sm:$0xff]
        %v446 = vld [vmem:[%s179 + $0x750] sm:$0xff]
        %v447 = vld [vmem:[%s179 + $0x758] sm:$0xff]
        %v448 = vld [vmem:[%s179 + $0x760] sm:$0xff]
        %v449 = vld [vmem:[%s179 + $0x768] sm:$0xff]
        %v450 = vld [vmem:[%s179 + $0x770] sm:$0xff]
        %v451 = vld [vmem:[%s179 + $0x778] sm:$0xff]
        %v452 = vld [vmem:[%s179 + $0x780] sm:$0xff]
        %v453 = vld [vmem:[%s179 + $0x788] sm:$0xff]
        %v454 = vld [vmem:[%s179 + $0x790] sm:$0xff]
        %v455 = vld [vmem:[%s179 + $0x798] sm:$0xff]
        %v456 = vld [vmem:[%s179 + $0x7a0] sm:$0xff]
        %v457 = vld [vmem:[%s179 + $0x7a8] sm:$0xff]
        %v458 = vld [vmem:[%s179 + $0x7b0] sm:$0xff]
        %v459 = vld [vmem:[%s179 + $0x7b8] sm:$0xff]
        %v460 = vld [vmem:[%s179 + $0x7c0] sm:$0xff]
        %v461 = vld [vmem:[%s179 + $0x7c8] sm:$0xff]
        %v462 = vld [vmem:[%s179 + $0x7d0] sm:$0xff]
        %v463 = vld [vmem:[%s179 + $0x7d8] sm:$0xff]
        %v464 = vld [vmem:[%s179 + $0x7e0] sm:$0xff]
        %v465 = vld [vmem:[%s179 + $0x7e8] sm:$0xff]
        %v466 = vld [vmem:[%s179 + $0x7f0] sm:$0xff]
        %v467 = vld [vmem:[%s179 + $0x7f8] sm:$0xff]
        %v476 = vunpack.c.l.b16 %v204
        %v477 = vunpack.c.h.b16 %v204
        %v478 = vunpack.c.l.b16 %v205
        %v479 = vunpack.c.h.b16 %v205
        %v480 = vunpack.c.l.b16 %v206
        %v481 = vunpack.c.h.b16 %v206
        %v482 = vunpack.c.l.b16 %v207
        %v483 = vunpack.c.h.b16 %v207
        %v484 = vunpack.c.l.b16 %v208
        %v485 = vunpack.c.h.b16 %v208
        %v486 = vunpack.c.l.b16 %v209
        %v487 = vunpack.c.h.b16 %v209
        %v488 = vunpack.c.l.b16 %v210
        %v489 = vunpack.c.h.b16 %v210
        %v490 = vunpack.c.l.b16 %v211
        %v491 = vunpack.c.h.b16 %v211
        %v492 = vpack.c.b16 %v484, %v476
        %v493 = vpack.c.b16 %v485, %v477
        %v494 = vpack.c.b16 %v486, %v478
        %v495 = vpack.c.b16 %v487, %v479
        %v496 = vpack.c.b16 %v488, %v480
        %v497 = vpack.c.b16 %v489, %v481
        %v498 = vpack.c.b16 %v490, %v482
        %v499 = vpack.c.b16 %v491, %v483
        %v764 = vunpack.c.l.b16 %v212
        %v765 = vunpack.c.h.b16 %v212
        %v766 = vunpack.c.l.b16 %v213
        %v767 = vunpack.c.h.b16 %v213
        %v768 = vunpack.c.l.b16 %v214
        %v769 = vunpack.c.h.b16 %v214
        %v770 = vunpack.c.l.b16 %v215
        %v771 = vunpack.c.h.b16 %v215
        %v772 = vunpack.c.l.b16 %v216
        %v773 = vunpack.c.h.b16 %v216
        %v774 = vunpack.c.l.b16 %v217
        %v775 = vunpack.c.h.b16 %v217
        %v776 = vunpack.c.l.b16 %v218
        %v777 = vunpack.c.h.b16 %v218
        %v778 = vunpack.c.l.b16 %v219
        %v779 = vunpack.c.h.b16 %v219
        %v780 = vunpack.c.l.b16 %v220
        %v781 = vunpack.c.h.b16 %v220
        %v782 = vunpack.c.l.b16 %v221
        %v783 = vunpack.c.h.b16 %v221
        %v784 = vunpack.c.l.b16 %v222
        %v785 = vunpack.c.h.b16 %v222
        %v786 = vunpack.c.l.b16 %v223
        %v787 = vunpack.c.h.b16 %v223
        %v788 = vunpack.c.l.b16 %v224
        %v789 = vunpack.c.h.b16 %v224
        %v790 = vunpack.c.l.b16 %v225
        %v791 = vunpack.c.h.b16 %v225
        %v792 = vunpack.c.l.b16 %v226
        %v793 = vunpack.c.h.b16 %v226
        %v794 = vunpack.c.l.b16 %v227
        %v795 = vunpack.c.h.b16 %v227
        %v796 = vunpack.c.l.b16 %v228
        %v797 = vunpack.c.h.b16 %v228
        %v798 = vunpack.c.l.b16 %v229
        %v799 = vunpack.c.h.b16 %v229
        %v800 = vunpack.c.l.b16 %v230
        %v801 = vunpack.c.h.b16 %v230
        %v802 = vunpack.c.l.b16 %v231
        %v803 = vunpack.c.h.b16 %v231
        %v804 = vunpack.c.l.b16 %v232
        %v805 = vunpack.c.h.b16 %v232
        %v806 = vunpack.c.l.b16 %v233
        %v807 = vunpack.c.h.b16 %v233
        %v808 = vunpack.c.l.b16 %v234
        %v809 = vunpack.c.h.b16 %v234
        %v810 = vunpack.c.l.b16 %v235
        %v811 = vunpack.c.h.b16 %v235
        %v812 = vunpack.c.l.b16 %v236
        %v813 = vunpack.c.h.b16 %v236
        %v814 = vunpack.c.l.b16 %v237
        %v815 = vunpack.c.h.b16 %v237
        %v816 = vunpack.c.l.b16 %v238
        %v817 = vunpack.c.h.b16 %v238
        %v818 = vunpack.c.l.b16 %v239
        %v819 = vunpack.c.h.b16 %v239
        %v820 = vunpack.c.l.b16 %v240
        %v821 = vunpack.c.h.b16 %v240
        %v822 = vunpack.c.l.b16 %v241
        %v823 = vunpack.c.h.b16 %v241
        %v824 = vunpack.c.l.b16 %v242
        %v825 = vunpack.c.h.b16 %v242
        %v826 = vunpack.c.l.b16 %v243
        %v827 = vunpack.c.h.b16 %v243
        %v828 = vunpack.c.l.b16 %v244
        %v829 = vunpack.c.h.b16 %v244
        %v830 = vunpack.c.l.b16 %v245
        %v831 = vunpack.c.h.b16 %v245
        %v832 = vunpack.c.l.b16 %v246
        %v833 = vunpack.c.h.b16 %v246
        %v834 = vunpack.c.l.b16 %v247
        %v835 = vunpack.c.h.b16 %v247
        %v836 = vunpack.c.l.b16 %v248
        %v837 = vunpack.c.h.b16 %v248
        %v838 = vunpack.c.l.b16 %v249
        %v839 = vunpack.c.h.b16 %v249
        %v840 = vunpack.c.l.b16 %v250
        %v841 = vunpack.c.h.b16 %v250
        %v842 = vunpack.c.l.b16 %v251
        %v843 = vunpack.c.h.b16 %v251
        %v844 = vunpack.c.l.b16 %v252
        %v845 = vunpack.c.h.b16 %v252
        %v846 = vunpack.c.l.b16 %v253
        %v847 = vunpack.c.h.b16 %v253
        %v848 = vunpack.c.l.b16 %v254
        %v849 = vunpack.c.h.b16 %v254
        %v850 = vunpack.c.l.b16 %v255
        %v851 = vunpack.c.h.b16 %v255
        %v852 = vunpack.c.l.b16 %v256
        %v853 = vunpack.c.h.b16 %v256
        %v854 = vunpack.c.l.b16 %v257
        %v855 = vunpack.c.h.b16 %v257
        %v856 = vunpack.c.l.b16 %v258
        %v857 = vunpack.c.h.b16 %v258
        %v858 = vunpack.c.l.b16 %v259
        %v859 = vunpack.c.h.b16 %v259
        %v860 = vunpack.c.l.b16 %v260
        %v861 = vunpack.c.h.b16 %v260
        %v862 = vunpack.c.l.b16 %v261
        %v863 = vunpack.c.h.b16 %v261
        %v864 = vunpack.c.l.b16 %v262
        %v865 = vunpack.c.h.b16 %v262
        %v866 = vunpack.c.l.b16 %v263
        %v867 = vunpack.c.h.b16 %v263
        %v868 = vunpack.c.l.b16 %v264
        %v869 = vunpack.c.h.b16 %v264
        %v870 = vunpack.c.l.b16 %v265
        %v871 = vunpack.c.h.b16 %v265
        %v872 = vunpack.c.l.b16 %v266
        %v873 = vunpack.c.h.b16 %v266
        %v874 = vunpack.c.l.b16 %v267
        %v875 = vunpack.c.h.b16 %v267
        %v876 = vunpack.c.l.b16 %v268
        %v877 = vunpack.c.h.b16 %v268
        %v878 = vunpack.c.l.b16 %v269
        %v879 = vunpack.c.h.b16 %v269
        %v880 = vunpack.c.l.b16 %v270
        %v881 = vunpack.c.h.b16 %v270
        %v882 = vunpack.c.l.b16 %v271
        %v883 = vunpack.c.h.b16 %v271
        %v884 = vunpack.c.l.b16 %v272
        %v885 = vunpack.c.h.b16 %v272
        %v886 = vunpack.c.l.b16 %v273
        %v887 = vunpack.c.h.b16 %v273
        %v888 = vunpack.c.l.b16 %v274
        %v889 = vunpack.c.h.b16 %v274
        %v890 = vunpack.c.l.b16 %v275
        %v891 = vunpack.c.h.b16 %v275
        %v892 = vunpack.c.l.b16 %v276
        %v893 = vunpack.c.h.b16 %v276
        %v894 = vunpack.c.l.b16 %v277
        %v895 = vunpack.c.h.b16 %v277
        %v896 = vunpack.c.l.b16 %v278
        %v897 = vunpack.c.h.b16 %v278
        %v898 = vunpack.c.l.b16 %v279
        %v899 = vunpack.c.h.b16 %v279
        %v900 = vunpack.c.l.b16 %v280
        %v901 = vunpack.c.h.b16 %v280
        %v902 = vunpack.c.l.b16 %v281
        %v903 = vunpack.c.h.b16 %v281
        %v904 = vunpack.c.l.b16 %v282
        %v905 = vunpack.c.h.b16 %v282
        %v906 = vunpack.c.l.b16 %v283
        %v907 = vunpack.c.h.b16 %v283
        %v908 = vunpack.c.l.b16 %v284
        %v909 = vunpack.c.h.b16 %v284
        %v910 = vunpack.c.l.b16 %v285
        %v911 = vunpack.c.h.b16 %v285
        %v912 = vunpack.c.l.b16 %v286
        %v913 = vunpack.c.h.b16 %v286
        %v914 = vunpack.c.l.b16 %v287
        %v915 = vunpack.c.h.b16 %v287
        %v916 = vunpack.c.l.b16 %v288
        %v917 = vunpack.c.h.b16 %v288
        %v918 = vunpack.c.l.b16 %v289
        %v919 = vunpack.c.h.b16 %v289
        %v920 = vunpack.c.l.b16 %v290
        %v921 = vunpack.c.h.b16 %v290
        %v922 = vunpack.c.l.b16 %v291
        %v923 = vunpack.c.h.b16 %v291
        %v924 = vunpack.c.l.b16 %v292
        %v925 = vunpack.c.h.b16 %v292
        %v926 = vunpack.c.l.b16 %v293
        %v927 = vunpack.c.h.b16 %v293
        %v928 = vunpack.c.l.b16 %v294
        %v929 = vunpack.c.h.b16 %v294
        %v930 = vunpack.c.l.b16 %v295
        %v931 = vunpack.c.h.b16 %v295
        %v932 = vunpack.c.l.b16 %v296
        %v933 = vunpack.c.h.b16 %v296
        %v934 = vunpack.c.l.b16 %v297
        %v935 = vunpack.c.h.b16 %v297
        %v936 = vunpack.c.l.b16 %v298
        %v937 = vunpack.c.h.b16 %v298
        %v938 = vunpack.c.l.b16 %v299
        %v939 = vunpack.c.h.b16 %v299
        %v940 = vunpack.c.l.b16 %v300
        %v941 = vunpack.c.h.b16 %v300
        %v942 = vunpack.c.l.b16 %v301
        %v943 = vunpack.c.h.b16 %v301
        %v944 = vunpack.c.l.b16 %v302
        %v945 = vunpack.c.h.b16 %v302
        %v946 = vunpack.c.l.b16 %v303
        %v947 = vunpack.c.h.b16 %v303
        %v948 = vunpack.c.l.b16 %v304
        %v949 = vunpack.c.h.b16 %v304
        %v950 = vunpack.c.l.b16 %v305
        %v951 = vunpack.c.h.b16 %v305
        %v952 = vunpack.c.l.b16 %v306
        %v953 = vunpack.c.h.b16 %v306
        %v954 = vunpack.c.l.b16 %v307
        %v955 = vunpack.c.h.b16 %v307
        %v956 = vunpack.c.l.b16 %v308
        %v957 = vunpack.c.h.b16 %v308
        %v958 = vunpack.c.l.b16 %v309
        %v959 = vunpack.c.h.b16 %v309
        %v960 = vunpack.c.l.b16 %v310
        %v961 = vunpack.c.h.b16 %v310
        %v962 = vunpack.c.l.b16 %v311
        %v963 = vunpack.c.h.b16 %v311
        %v964 = vunpack.c.l.b16 %v312
        %v965 = vunpack.c.h.b16 %v312
        %v966 = vunpack.c.l.b16 %v313
        %v967 = vunpack.c.h.b16 %v313
        %v968 = vunpack.c.l.b16 %v314
        %v969 = vunpack.c.h.b16 %v314
        %v970 = vunpack.c.l.b16 %v315
        %v971 = vunpack.c.h.b16 %v315
        %v972 = vunpack.c.l.b16 %v316
        %v973 = vunpack.c.h.b16 %v316
        %v974 = vunpack.c.l.b16 %v317
        %v975 = vunpack.c.h.b16 %v317
        %v976 = vunpack.c.l.b16 %v318
        %v977 = vunpack.c.h.b16 %v318
        %v978 = vunpack.c.l.b16 %v319
        %v979 = vunpack.c.h.b16 %v319
        %v980 = vunpack.c.l.b16 %v320
        %v981 = vunpack.c.h.b16 %v320
        %v982 = vunpack.c.l.b16 %v321
        %v983 = vunpack.c.h.b16 %v321
        %v984 = vunpack.c.l.b16 %v322
        %v985 = vunpack.c.h.b16 %v322
        %v986 = vunpack.c.l.b16 %v323
        %v987 = vunpack.c.h.b16 %v323
        %v988 = vunpack.c.l.b16 %v324
        %v989 = vunpack.c.h.b16 %v324
        %v990 = vunpack.c.l.b16 %v325
        %v991 = vunpack.c.h.b16 %v325
        %v992 = vunpack.c.l.b16 %v326
        %v993 = vunpack.c.h.b16 %v326
        %v994 = vunpack.c.l.b16 %v327
        %v995 = vunpack.c.h.b16 %v327
        %v996 = vunpack.c.l.b16 %v328
        %v997 = vunpack.c.h.b16 %v328
        %v998 = vunpack.c.l.b16 %v329
        %v999 = vunpack.c.h.b16 %v329
        %v1000 = vunpack.c.l.b16 %v330
        %v1001 = vunpack.c.h.b16 %v330
        %v1002 = vunpack.c.l.b16 %v331
        %v1003 = vunpack.c.h.b16 %v331
        %v1004 = vunpack.c.l.b16 %v332
        %v1005 = vunpack.c.h.b16 %v332
        %v1006 = vunpack.c.l.b16 %v333
        %v1007 = vunpack.c.h.b16 %v333
        %v1008 = vunpack.c.l.b16 %v334
        %v1009 = vunpack.c.h.b16 %v334
        %v1010 = vunpack.c.l.b16 %v335
        %v1011 = vunpack.c.h.b16 %v335
        %v1012 = vunpack.c.l.b16 %v336
        %v1013 = vunpack.c.h.b16 %v336
        %v1014 = vunpack.c.l.b16 %v337
        %v1015 = vunpack.c.h.b16 %v337
        %v1016 = vunpack.c.l.b16 %v338
        %v1017 = vunpack.c.h.b16 %v338
        %v1018 = vunpack.c.l.b16 %v339
        %v1019 = vunpack.c.h.b16 %v339
        %v1020 = vunpack.c.l.b16 %v340
        %v1021 = vunpack.c.h.b16 %v340
        %v1022 = vunpack.c.l.b16 %v341
        %v1023 = vunpack.c.h.b16 %v341
        %v1024 = vunpack.c.l.b16 %v342
        %v1025 = vunpack.c.h.b16 %v342
        %v1026 = vunpack.c.l.b16 %v343
        %v1027 = vunpack.c.h.b16 %v343
        %v1028 = vunpack.c.l.b16 %v344
        %v1029 = vunpack.c.h.b16 %v344
        %v1030 = vunpack.c.l.b16 %v345
        %v1031 = vunpack.c.h.b16 %v345
        %v1032 = vunpack.c.l.b16 %v346
        %v1033 = vunpack.c.h.b16 %v346
        %v1034 = vunpack.c.l.b16 %v347
        %v1035 = vunpack.c.h.b16 %v347
        %v1036 = vunpack.c.l.b16 %v348
        %v1037 = vunpack.c.h.b16 %v348
        %v1038 = vunpack.c.l.b16 %v349
        %v1039 = vunpack.c.h.b16 %v349
        %v1040 = vunpack.c.l.b16 %v350
        %v1041 = vunpack.c.h.b16 %v350
        %v1042 = vunpack.c.l.b16 %v351
        %v1043 = vunpack.c.h.b16 %v351
        %v1044 = vunpack.c.l.b16 %v352
        %v1045 = vunpack.c.h.b16 %v352
        %v1046 = vunpack.c.l.b16 %v353
        %v1047 = vunpack.c.h.b16 %v353
        %v1048 = vunpack.c.l.b16 %v354
        %v1049 = vunpack.c.h.b16 %v354
        %v1050 = vunpack.c.l.b16 %v355
        %v1051 = vunpack.c.h.b16 %v355
        %v1052 = vunpack.c.l.b16 %v356
        %v1053 = vunpack.c.h.b16 %v356
        %v1054 = vunpack.c.l.b16 %v357
        %v1055 = vunpack.c.h.b16 %v357
        %v1056 = vunpack.c.l.b16 %v358
        %v1057 = vunpack.c.h.b16 %v358
        %v1058 = vunpack.c.l.b16 %v359
        %v1059 = vunpack.c.h.b16 %v359
        %v1060 = vunpack.c.l.b16 %v360
        %v1061 = vunpack.c.h.b16 %v360
        %v1062 = vunpack.c.l.b16 %v361
        %v1063 = vunpack.c.h.b16 %v361
        %v1064 = vunpack.c.l.b16 %v362
        %v1065 = vunpack.c.h.b16 %v362
        %v1066 = vunpack.c.l.b16 %v363
        %v1067 = vunpack.c.h.b16 %v363
        %v1068 = vunpack.c.l.b16 %v364
        %v1069 = vunpack.c.h.b16 %v364
        %v1070 = vunpack.c.l.b16 %v365
        %v1071 = vunpack.c.h.b16 %v365
        %v1072 = vunpack.c.l.b16 %v366
        %v1073 = vunpack.c.h.b16 %v366
        %v1074 = vunpack.c.l.b16 %v367
        %v1075 = vunpack.c.h.b16 %v367
        %v1076 = vunpack.c.l.b16 %v368
        %v1077 = vunpack.c.h.b16 %v368
        %v1078 = vunpack.c.l.b16 %v369
        %v1079 = vunpack.c.h.b16 %v369
        %v1080 = vunpack.c.l.b16 %v370
        %v1081 = vunpack.c.h.b16 %v370
        %v1082 = vunpack.c.l.b16 %v371
        %v1083 = vunpack.c.h.b16 %v371
        %v1084 = vunpack.c.l.b16 %v372
        %v1085 = vunpack.c.h.b16 %v372
        %v1086 = vunpack.c.l.b16 %v373
        %v1087 = vunpack.c.h.b16 %v373
        %v1088 = vunpack.c.l.b16 %v374
        %v1089 = vunpack.c.h.b16 %v374
        %v1090 = vunpack.c.l.b16 %v375
        %v1091 = vunpack.c.h.b16 %v375
        %v1092 = vunpack.c.l.b16 %v376
        %v1093 = vunpack.c.h.b16 %v376
        %v1094 = vunpack.c.l.b16 %v377
        %v1095 = vunpack.c.h.b16 %v377
        %v1096 = vunpack.c.l.b16 %v378
        %v1097 = vunpack.c.h.b16 %v378
        %v1098 = vunpack.c.l.b16 %v379
        %v1099 = vunpack.c.h.b16 %v379
        %v1100 = vunpack.c.l.b16 %v380
        %v1101 = vunpack.c.h.b16 %v380
        %v1102 = vunpack.c.l.b16 %v381
        %v1103 = vunpack.c.h.b16 %v381
        %v1104 = vunpack.c.l.b16 %v382
        %v1105 = vunpack.c.h.b16 %v382
        %v1106 = vunpack.c.l.b16 %v383
        %v1107 = vunpack.c.h.b16 %v383
        %v1108 = vunpack.c.l.b16 %v384
        %v1109 = vunpack.c.h.b16 %v384
        %v1110 = vunpack.c.l.b16 %v385
        %v1111 = vunpack.c.h.b16 %v385
        %v1112 = vunpack.c.l.b16 %v386
        %v1113 = vunpack.c.h.b16 %v386
        %v1114 = vunpack.c.l.b16 %v387
        %v1115 = vunpack.c.h.b16 %v387
        %v1116 = vunpack.c.l.b16 %v388
        %v1117 = vunpack.c.h.b16 %v388
        %v1118 = vunpack.c.l.b16 %v389
        %v1119 = vunpack.c.h.b16 %v389
        %v1120 = vunpack.c.l.b16 %v390
        %v1121 = vunpack.c.h.b16 %v390
        %v1122 = vunpack.c.l.b16 %v391
        %v1123 = vunpack.c.h.b16 %v391
        %v1124 = vunpack.c.l.b16 %v392
        %v1125 = vunpack.c.h.b16 %v392
        %v1126 = vunpack.c.l.b16 %v393
        %v1127 = vunpack.c.h.b16 %v393
        %v1128 = vunpack.c.l.b16 %v394
        %v1129 = vunpack.c.h.b16 %v394
        %v1130 = vunpack.c.l.b16 %v395
        %v1131 = vunpack.c.h.b16 %v395
        %v1132 = vunpack.c.l.b16 %v396
        %v1133 = vunpack.c.h.b16 %v396
        %v1134 = vunpack.c.l.b16 %v397
        %v1135 = vunpack.c.h.b16 %v397
        %v1136 = vunpack.c.l.b16 %v398
        %v1137 = vunpack.c.h.b16 %v398
        %v1138 = vunpack.c.l.b16 %v399
        %v1139 = vunpack.c.h.b16 %v399
        %v1140 = vunpack.c.l.b16 %v400
        %v1141 = vunpack.c.h.b16 %v400
        %v1142 = vunpack.c.l.b16 %v401
        %v1143 = vunpack.c.h.b16 %v401
        %v1144 = vunpack.c.l.b16 %v402
        %v1145 = vunpack.c.h.b16 %v402
        %v1146 = vunpack.c.l.b16 %v403
        %v1147 = vunpack.c.h.b16 %v403
        %v1148 = vunpack.c.l.b16 %v404
        %v1149 = vunpack.c.h.b16 %v404
        %v1150 = vunpack.c.l.b16 %v405
        %v1151 = vunpack.c.h.b16 %v405
        %v1152 = vunpack.c.l.b16 %v406
        %v1153 = vunpack.c.h.b16 %v406
        %v1154 = vunpack.c.l.b16 %v407
        %v1155 = vunpack.c.h.b16 %v407
        %v1156 = vunpack.c.l.b16 %v408
        %v1157 = vunpack.c.h.b16 %v408
        %v1158 = vunpack.c.l.b16 %v409
        %v1159 = vunpack.c.h.b16 %v409
        %v1160 = vunpack.c.l.b16 %v410
        %v1161 = vunpack.c.h.b16 %v410
        %v1162 = vunpack.c.l.b16 %v411
        %v1163 = vunpack.c.h.b16 %v411
        %v1164 = vunpack.c.l.b16 %v412
        %v1165 = vunpack.c.h.b16 %v412
        %v1166 = vunpack.c.l.b16 %v413
        %v1167 = vunpack.c.h.b16 %v413
        %v1168 = vunpack.c.l.b16 %v414
        %v1169 = vunpack.c.h.b16 %v414
        %v1170 = vunpack.c.l.b16 %v415
        %v1171 = vunpack.c.h.b16 %v415
        %v1172 = vunpack.c.l.b16 %v416
        %v1173 = vunpack.c.h.b16 %v416
        %v1174 = vunpack.c.l.b16 %v417
        %v1175 = vunpack.c.h.b16 %v417
        %v1176 = vunpack.c.l.b16 %v418
        %v1177 = vunpack.c.h.b16 %v418
        %v1178 = vunpack.c.l.b16 %v419
        %v1179 = vunpack.c.h.b16 %v419
        %v1180 = vunpack.c.l.b16 %v420
        %v1181 = vunpack.c.h.b16 %v420
        %v1182 = vunpack.c.l.b16 %v421
        %v1183 = vunpack.c.h.b16 %v421
        %v1184 = vunpack.c.l.b16 %v422
        %v1185 = vunpack.c.h.b16 %v422
        %v1186 = vunpack.c.l.b16 %v423
        %v1187 = vunpack.c.h.b16 %v423
        %v1188 = vunpack.c.l.b16 %v424
        %v1189 = vunpack.c.h.b16 %v424
        %v1190 = vunpack.c.l.b16 %v425
        %v1191 = vunpack.c.h.b16 %v425
        %v1192 = vunpack.c.l.b16 %v426
        %v1193 = vunpack.c.h.b16 %v426
        %v1194 = vunpack.c.l.b16 %v427
        %v1195 = vunpack.c.h.b16 %v427
        %v1196 = vunpack.c.l.b16 %v428
        %v1197 = vunpack.c.h.b16 %v428
        %v1198 = vunpack.c.l.b16 %v429
        %v1199 = vunpack.c.h.b16 %v429
        %v1200 = vunpack.c.l.b16 %v430
        %v1201 = vunpack.c.h.b16 %v430
        %v1202 = vunpack.c.l.b16 %v431
        %v1203 = vunpack.c.h.b16 %v431
        %v1204 = vunpack.c.l.b16 %v432
        %v1205 = vunpack.c.h.b16 %v432
        %v1206 = vunpack.c.l.b16 %v433
        %v1207 = vunpack.c.h.b16 %v433
        %v1208 = vunpack.c.l.b16 %v434
        %v1209 = vunpack.c.h.b16 %v434
        %v1210 = vunpack.c.l.b16 %v435
        %v1211 = vunpack.c.h.b16 %v435
        %v1212 = vunpack.c.l.b16 %v436
        %v1213 = vunpack.c.h.b16 %v436
        %v1214 = vunpack.c.l.b16 %v437
        %v1215 = vunpack.c.h.b16 %v437
        %v1216 = vunpack.c.l.b16 %v438
        %v1217 = vunpack.c.h.b16 %v438
        %v1218 = vunpack.c.l.b16 %v439
        %v1219 = vunpack.c.h.b16 %v439
        %v1220 = vunpack.c.l.b16 %v440
        %v1221 = vunpack.c.h.b16 %v440
        %v1222 = vunpack.c.l.b16 %v441
        %v1223 = vunpack.c.h.b16 %v441
        %v1224 = vunpack.c.l.b16 %v442
        %v1225 = vunpack.c.h.b16 %v442
        %v1226 = vunpack.c.l.b16 %v443
        %v1227 = vunpack.c.h.b16 %v443
        %v1228 = vunpack.c.l.b16 %v444
        %v1229 = vunpack.c.h.b16 %v444
        %v1230 = vunpack.c.l.b16 %v445
        %v1231 = vunpack.c.h.b16 %v445
        %v1232 = vunpack.c.l.b16 %v446
        %v1233 = vunpack.c.h.b16 %v446
        %v1234 = vunpack.c.l.b16 %v447
        %v1235 = vunpack.c.h.b16 %v447
        %v1236 = vunpack.c.l.b16 %v448
        %v1237 = vunpack.c.h.b16 %v448
        %v1238 = vunpack.c.l.b16 %v449
        %v1239 = vunpack.c.h.b16 %v449
        %v1240 = vunpack.c.l.b16 %v450
        %v1241 = vunpack.c.h.b16 %v450
        %v1242 = vunpack.c.l.b16 %v451
        %v1243 = vunpack.c.h.b16 %v451
        %v1244 = vunpack.c.l.b16 %v452
        %v1245 = vunpack.c.h.b16 %v452
        %v1246 = vunpack.c.l.b16 %v453
        %v1247 = vunpack.c.h.b16 %v453
        %v1248 = vunpack.c.l.b16 %v454
        %v1249 = vunpack.c.h.b16 %v454
        %v1250 = vunpack.c.l.b16 %v455
        %v1251 = vunpack.c.h.b16 %v455
        %v1252 = vunpack.c.l.b16 %v456
        %v1253 = vunpack.c.h.b16 %v456
        %v1254 = vunpack.c.l.b16 %v457
        %v1255 = vunpack.c.h.b16 %v457
        %v1256 = vunpack.c.l.b16 %v458
        %v1257 = vunpack.c.h.b16 %v458
        %v1258 = vunpack.c.l.b16 %v459
        %v1259 = vunpack.c.h.b16 %v459
        %v1260 = vunpack.c.l.b16 %v460
        %v1261 = vunpack.c.h.b16 %v460
        %v1262 = vunpack.c.l.b16 %v461
        %v1263 = vunpack.c.h.b16 %v461
        %v1264 = vunpack.c.l.b16 %v462
        %v1265 = vunpack.c.h.b16 %v462
        %v1266 = vunpack.c.l.b16 %v463
        %v1267 = vunpack.c.h.b16 %v463
        %v1268 = vunpack.c.l.b16 %v464
        %v1269 = vunpack.c.h.b16 %v464
        %v1270 = vunpack.c.l.b16 %v465
        %v1271 = vunpack.c.h.b16 %v465
        %v1272 = vunpack.c.l.b16 %v466
        %v1273 = vunpack.c.h.b16 %v466
        %v1274 = vunpack.c.l.b16 %v467
        %v1275 = vunpack.c.h.b16 %v467
        %v1276 = vpack.c.b16 %v768, %v764
        %v1277 = vpack.c.b16 %v769, %v765
        %v1278 = vpack.c.b16 %v770, %v766
        %v1279 = vpack.c.b16 %v771, %v767
        %v1280 = vpack.c.b16 %v776, %v772
        %v1281 = vpack.c.b16 %v777, %v773
        %v1282 = vpack.c.b16 %v778, %v774
        %v1283 = vpack.c.b16 %v779, %v775
        %v1284 = vpack.c.b16 %v784, %v780
        %v1285 = vpack.c.b16 %v785, %v781
        %v1286 = vpack.c.b16 %v786, %v782
        %v1287 = vpack.c.b16 %v787, %v783
        %v1288 = vpack.c.b16 %v792, %v788
        %v1289 = vpack.c.b16 %v793, %v789
        %v1290 = vpack.c.b16 %v794, %v790
        %v1291 = vpack.c.b16 %v795, %v791
        %v1292 = vpack.c.b16 %v800, %v796
        %v1293 = vpack.c.b16 %v801, %v797
        %v1294 = vpack.c.b16 %v802, %v798
        %v1295 = vpack.c.b16 %v803, %v799
        %v1296 = vpack.c.b16 %v808, %v804
        %v1297 = vpack.c.b16 %v809, %v805
        %v1298 = vpack.c.b16 %v810, %v806
        %v1299 = vpack.c.b16 %v811, %v807
        %v1300 = vpack.c.b16 %v816, %v812
        %v1301 = vpack.c.b16 %v817, %v813
        %v1302 = vpack.c.b16 %v818, %v814
        %v1303 = vpack.c.b16 %v819, %v815
        %v1304 = vpack.c.b16 %v824, %v820
        %v1305 = vpack.c.b16 %v825, %v821
        %v1306 = vpack.c.b16 %v826, %v822
        %v1307 = vpack.c.b16 %v827, %v823
        %v1308 = vpack.c.b16 %v832, %v828
        %v1309 = vpack.c.b16 %v833, %v829
        %v1310 = vpack.c.b16 %v834, %v830
        %v1311 = vpack.c.b16 %v835, %v831
        %v1312 = vpack.c.b16 %v840, %v836
        %v1313 = vpack.c.b16 %v841, %v837
        %v1314 = vpack.c.b16 %v842, %v838
        %v1315 = vpack.c.b16 %v843, %v839
        %v1316 = vpack.c.b16 %v848, %v844
        %v1317 = vpack.c.b16 %v849, %v845
        %v1318 = vpack.c.b16 %v850, %v846
        %v1319 = vpack.c.b16 %v851, %v847
        %v1320 = vpack.c.b16 %v856, %v852
        %v1321 = vpack.c.b16 %v857, %v853
        %v1322 = vpack.c.b16 %v858, %v854
        %v1323 = vpack.c.b16 %v859, %v855
        %v1324 = vpack.c.b16 %v864, %v860
        %v1325 = vpack.c.b16 %v865, %v861
        %v1326 = vpack.c.b16 %v866, %v862
        %v1327 = vpack.c.b16 %v867, %v863
        %v1328 = vpack.c.b16 %v872, %v868
        %v1329 = vpack.c.b16 %v873, %v869
        %v1330 = vpack.c.b16 %v874, %v870
        %v1331 = vpack.c.b16 %v875, %v871
        %v1332 = vpack.c.b16 %v880, %v876
        %v1333 = vpack.c.b16 %v881, %v877
        %v1334 = vpack.c.b16 %v882, %v878
        %v1335 = vpack.c.b16 %v883, %v879
        %v1336 = vpack.c.b16 %v888, %v884
        %v1337 = vpack.c.b16 %v889, %v885
        %v1338 = vpack.c.b16 %v890, %v886
        %v1339 = vpack.c.b16 %v891, %v887
        %v1340 = vpack.c.b16 %v896, %v892
        %v1341 = vpack.c.b16 %v897, %v893
        %v1342 = vpack.c.b16 %v898, %v894
        %v1343 = vpack.c.b16 %v899, %v895
        %v1344 = vpack.c.b16 %v904, %v900
        %v1345 = vpack.c.b16 %v905, %v901
        %v1346 = vpack.c.b16 %v906, %v902
        %v1347 = vpack.c.b16 %v907, %v903
        %v1348 = vpack.c.b16 %v912, %v908
        %v1349 = vpack.c.b16 %v913, %v909
        %v1350 = vpack.c.b16 %v914, %v910
        %v1351 = vpack.c.b16 %v915, %v911
        %v1352 = vpack.c.b16 %v920, %v916
        %v1353 = vpack.c.b16 %v921, %v917
        %v1354 = vpack.c.b16 %v922, %v918
        %v1355 = vpack.c.b16 %v923, %v919
        %v1356 = vpack.c.b16 %v928, %v924
        %v1357 = vpack.c.b16 %v929, %v925
        %v1358 = vpack.c.b16 %v930, %v926
        %v1359 = vpack.c.b16 %v931, %v927
        %v1360 = vpack.c.b16 %v936, %v932
        %v1361 = vpack.c.b16 %v937, %v933
        %v1362 = vpack.c.b16 %v938, %v934
        %v1363 = vpack.c.b16 %v939, %v935
        %v1364 = vpack.c.b16 %v944, %v940
        %v1365 = vpack.c.b16 %v945, %v941
        %v1366 = vpack.c.b16 %v946, %v942
        %v1367 = vpack.c.b16 %v947, %v943
        %v1368 = vpack.c.b16 %v952, %v948
        %v1369 = vpack.c.b16 %v953, %v949
        %v1370 = vpack.c.b16 %v954, %v950
        %v1371 = vpack.c.b16 %v955, %v951
        %v1372 = vpack.c.b16 %v960, %v956
        %v1373 = vpack.c.b16 %v961, %v957
        %v1374 = vpack.c.b16 %v962, %v958
        %v1375 = vpack.c.b16 %v963, %v959
        %v1376 = vpack.c.b16 %v968, %v964
        %v1377 = vpack.c.b16 %v969, %v965
        %v1378 = vpack.c.b16 %v970, %v966
        %v1379 = vpack.c.b16 %v971, %v967
        %v1380 = vpack.c.b16 %v976, %v972
        %v1381 = vpack.c.b16 %v977, %v973
        %v1382 = vpack.c.b16 %v978, %v974
        %v1383 = vpack.c.b16 %v979, %v975
        %v1384 = vpack.c.b16 %v984, %v980
        %v1385 = vpack.c.b16 %v985, %v981
        %v1386 = vpack.c.b16 %v986, %v982
        %v1387 = vpack.c.b16 %v987, %v983
        %v1388 = vpack.c.b16 %v992, %v988
        %v1389 = vpack.c.b16 %v993, %v989
        %v1390 = vpack.c.b16 %v994, %v990
        %v1391 = vpack.c.b16 %v995, %v991
        %v1392 = vpack.c.b16 %v1000, %v996
        %v1393 = vpack.c.b16 %v1001, %v997
        %v1394 = vpack.c.b16 %v1002, %v998
        %v1395 = vpack.c.b16 %v1003, %v999
        %v1396 = vpack.c.b16 %v1008, %v1004
        %v1397 = vpack.c.b16 %v1009, %v1005
        %v1398 = vpack.c.b16 %v1010, %v1006
        %v1399 = vpack.c.b16 %v1011, %v1007
        %v1400 = vpack.c.b16 %v1016, %v1012
        %v1401 = vpack.c.b16 %v1017, %v1013
        %v1402 = vpack.c.b16 %v1018, %v1014
        %v1403 = vpack.c.b16 %v1019, %v1015
        %v1404 = vpack.c.b16 %v1024, %v1020
        %v1405 = vpack.c.b16 %v1025, %v1021
        %v1406 = vpack.c.b16 %v1026, %v1022
        %v1407 = vpack.c.b16 %v1027, %v1023
        %v1408 = vpack.c.b16 %v1032, %v1028
        %v1409 = vpack.c.b16 %v1033, %v1029
        %v1410 = vpack.c.b16 %v1034, %v1030
        %v1411 = vpack.c.b16 %v1035, %v1031
        %v1412 = vpack.c.b16 %v1040, %v1036
        %v1413 = vpack.c.b16 %v1041, %v1037
        %v1414 = vpack.c.b16 %v1042, %v1038
        %v1415 = vpack.c.b16 %v1043, %v1039
        %v1416 = vpack.c.b16 %v1048, %v1044
        %v1417 = vpack.c.b16 %v1049, %v1045
        %v1418 = vpack.c.b16 %v1050, %v1046
        %v1419 = vpack.c.b16 %v1051, %v1047
        %v1420 = vpack.c.b16 %v1056, %v1052
        %v1421 = vpack.c.b16 %v1057, %v1053
        %v1422 = vpack.c.b16 %v1058, %v1054
        %v1423 = vpack.c.b16 %v1059, %v1055
        %v1424 = vpack.c.b16 %v1064, %v1060
        %v1425 = vpack.c.b16 %v1065, %v1061
        %v1426 = vpack.c.b16 %v1066, %v1062
        %v1427 = vpack.c.b16 %v1067, %v1063
        %v1428 = vpack.c.b16 %v1072, %v1068
        %v1429 = vpack.c.b16 %v1073, %v1069
        %v1430 = vpack.c.b16 %v1074, %v1070
        %v1431 = vpack.c.b16 %v1075, %v1071
        %v1432 = vpack.c.b16 %v1080, %v1076
        %v1433 = vpack.c.b16 %v1081, %v1077
        %v1434 = vpack.c.b16 %v1082, %v1078
        %v1435 = vpack.c.b16 %v1083, %v1079
        %v1436 = vpack.c.b16 %v1088, %v1084
        %v1437 = vpack.c.b16 %v1089, %v1085
        %v1438 = vpack.c.b16 %v1090, %v1086
        %v1439 = vpack.c.b16 %v1091, %v1087
        %v1440 = vpack.c.b16 %v1096, %v1092
        %v1441 = vpack.c.b16 %v1097, %v1093
        %v1442 = vpack.c.b16 %v1098, %v1094
        %v1443 = vpack.c.b16 %v1099, %v1095
        %v1444 = vpack.c.b16 %v1104, %v1100
        %v1445 = vpack.c.b16 %v1105, %v1101
        %v1446 = vpack.c.b16 %v1106, %v1102
        %v1447 = vpack.c.b16 %v1107, %v1103
        %v1448 = vpack.c.b16 %v1112, %v1108
        %v1449 = vpack.c.b16 %v1113, %v1109
        %v1450 = vpack.c.b16 %v1114, %v1110
        %v1451 = vpack.c.b16 %v1115, %v1111
        %v1452 = vpack.c.b16 %v1120, %v1116
        %v1453 = vpack.c.b16 %v1121, %v1117
        %v1454 = vpack.c.b16 %v1122, %v1118
        %v1455 = vpack.c.b16 %v1123, %v1119
        %v1456 = vpack.c.b16 %v1128, %v1124
        %v1457 = vpack.c.b16 %v1129, %v1125
        %v1458 = vpack.c.b16 %v1130, %v1126
        %v1459 = vpack.c.b16 %v1131, %v1127
        %v1460 = vpack.c.b16 %v1136, %v1132
        %v1461 = vpack.c.b16 %v1137, %v1133
        %v1462 = vpack.c.b16 %v1138, %v1134
        %v1463 = vpack.c.b16 %v1139, %v1135
        %v1464 = vpack.c.b16 %v1144, %v1140
        %v1465 = vpack.c.b16 %v1145, %v1141
        %v1466 = vpack.c.b16 %v1146, %v1142
        %v1467 = vpack.c.b16 %v1147, %v1143
        %v1468 = vpack.c.b16 %v1152, %v1148
        %v1469 = vpack.c.b16 %v1153, %v1149
        %v1470 = vpack.c.b16 %v1154, %v1150
        %v1471 = vpack.c.b16 %v1155, %v1151
        %v1472 = vpack.c.b16 %v1160, %v1156
        %v1473 = vpack.c.b16 %v1161, %v1157
        %v1474 = vpack.c.b16 %v1162, %v1158
        %v1475 = vpack.c.b16 %v1163, %v1159
        %v1476 = vpack.c.b16 %v1168, %v1164
        %v1477 = vpack.c.b16 %v1169, %v1165
        %v1478 = vpack.c.b16 %v1170, %v1166
        %v1479 = vpack.c.b16 %v1171, %v1167
        %v1480 = vpack.c.b16 %v1176, %v1172
        %v1481 = vpack.c.b16 %v1177, %v1173
        %v1482 = vpack.c.b16 %v1178, %v1174
        %v1483 = vpack.c.b16 %v1179, %v1175
        %v1484 = vpack.c.b16 %v1184, %v1180
        %v1485 = vpack.c.b16 %v1185, %v1181
        %v1486 = vpack.c.b16 %v1186, %v1182
        %v1487 = vpack.c.b16 %v1187, %v1183
        %v1488 = vpack.c.b16 %v1192, %v1188
        %v1489 = vpack.c.b16 %v1193, %v1189
        %v1490 = vpack.c.b16 %v1194, %v1190
        %v1491 = vpack.c.b16 %v1195, %v1191
        %v1492 = vpack.c.b16 %v1200, %v1196
        %v1493 = vpack.c.b16 %v1201, %v1197
        %v1494 = vpack.c.b16 %v1202, %v1198
        %v1495 = vpack.c.b16 %v1203, %v1199
        %v1496 = vpack.c.b16 %v1208, %v1204
        %v1497 = vpack.c.b16 %v1209, %v1205
        %v1498 = vpack.c.b16 %v1210, %v1206
        %v1499 = vpack.c.b16 %v1211, %v1207
        %v1500 = vpack.c.b16 %v1216, %v1212
        %v1501 = vpack.c.b16 %v1217, %v1213
        %v1502 = vpack.c.b16 %v1218, %v1214
        %v1503 = vpack.c.b16 %v1219, %v1215
        %v1504 = vpack.c.b16 %v1224, %v1220
        %v1505 = vpack.c.b16 %v1225, %v1221
        %v1506 = vpack.c.b16 %v1226, %v1222
        %v1507 = vpack.c.b16 %v1227, %v1223
        %v1508 = vpack.c.b16 %v1232, %v1228
        %v1509 = vpack.c.b16 %v1233, %v1229
        %v1510 = vpack.c.b16 %v1234, %v1230
        %v1511 = vpack.c.b16 %v1235, %v1231
        %v1512 = vpack.c.b16 %v1240, %v1236
        %v1513 = vpack.c.b16 %v1241, %v1237
        %v1514 = vpack.c.b16 %v1242, %v1238
        %v1515 = vpack.c.b16 %v1243, %v1239
        %v1516 = vpack.c.b16 %v1248, %v1244
        %v1517 = vpack.c.b16 %v1249, %v1245
        %v1518 = vpack.c.b16 %v1250, %v1246
        %v1519 = vpack.c.b16 %v1251, %v1247
        %v1520 = vpack.c.b16 %v1256, %v1252
        %v1521 = vpack.c.b16 %v1257, %v1253
        %v1522 = vpack.c.b16 %v1258, %v1254
        %v1523 = vpack.c.b16 %v1259, %v1255
        %v1524 = vpack.c.b16 %v1264, %v1260
        %v1525 = vpack.c.b16 %v1265, %v1261
        %v1526 = vpack.c.b16 %v1266, %v1262
        %v1527 = vpack.c.b16 %v1267, %v1263
        %v1528 = vpack.c.b16 %v1272, %v1268
        %v1529 = vpack.c.b16 %v1273, %v1269
        %v1530 = vpack.c.b16 %v1274, %v1270
        %v1531 = vpack.c.b16 %v1275, %v1271
        %1788 = vmatprep.subr.bf16.mxu0 %v1277
        %1789 = vmatpush1.bf16.msra.mxu0 %v1276
        %1790 = vmatprep.subr.bf16.mxu0 %v1281
        %1791 = vmatpush1.bf16.msra.mxu0 %v1280
        %1792 = vmatprep.subr.bf16.mxu0 %v1285
        %1793 = vmatpush1.bf16.msra.mxu0 %v1284
        %1794 = vmatprep.subr.bf16.mxu0 %v1289
        %1795 = vmatpush1.bf16.msra.mxu0 %v1288
        %1796 = vmatprep.subr.bf16.mxu0 %v1293
        %1797 = vmatpush1.bf16.msra.mxu0 %v1292
        %1798 = vmatprep.subr.bf16.mxu0 %v1297
        %1799 = vmatpush1.bf16.msra.mxu0 %v1296
        %1800 = vmatprep.subr.bf16.mxu0 %v1301
        %1801 = vmatpush1.bf16.msra.mxu0 %v1300
        %1802 = vmatprep.subr.bf16.mxu0 %v1305
        %1803 = vmatpush1.bf16.msra.mxu0 %v1304
        %1804 = vmatprep.subr.bf16.mxu0 %v1309
        %1805 = vmatpush1.bf16.msra.mxu0 %v1308
        %1806 = vmatprep.subr.bf16.mxu0 %v1313
        %1807 = vmatpush1.bf16.msra.mxu0 %v1312
        %1808 = vmatprep.subr.bf16.mxu0 %v1317
        %1809 = vmatpush1.bf16.msra.mxu0 %v1316
        %1810 = vmatprep.subr.bf16.mxu0 %v1321
        %1811 = vmatpush1.bf16.msra.mxu0 %v1320
        %1812 = vmatprep.subr.bf16.mxu0 %v1325
        %1813 = vmatpush1.bf16.msra.mxu0 %v1324
        %1814 = vmatprep.subr.bf16.mxu0 %v1329
        %1815 = vmatpush1.bf16.msra.mxu0 %v1328
        %1816 = vmatprep.subr.bf16.mxu0 %v1333
        %1817 = vmatpush1.bf16.msra.mxu0 %v1332
        %1818 = vmatprep.subr.bf16.mxu0 %v1337
        %1819 = vmatpush1.bf16.msra.mxu0 %v1336
        %1820 = vmatprep.mubr.bf16.mxu0 %v493
        %1821 = vmatmul.mubr.bf16.gmra.mrb[0].mxu0 %v492
        %v1822 = vpop.f32.mrb[0].mxu0
        %v1823 = vadd.f32 0.0, %v1822
        %v1824 = vpop.f32.mrb[0].mxu0
        %v1825 = vadd.f32 0.0, %v1824
        %v1826 = vpop.f32.mrb[0].mxu0
        %v1827 = vadd.f32 0.0, %v1826
        %v1828 = vpop.f32.mrb[0].mxu0
        %v1829 = vadd.f32 0.0, %v1828
        %1830 = vdwg.mxu0
        %1831 = vmatprep.subr.bf16.mxu0 %v1341
        %1832 = vmatpush1.bf16.msra.mxu0 %v1340
        %1833 = vmatprep.subr.bf16.mxu0 %v1345
        %1834 = vmatpush1.bf16.msra.mxu0 %v1344
        %1835 = vmatprep.subr.bf16.mxu0 %v1349
        %1836 = vmatpush1.bf16.msra.mxu0 %v1348
        %1837 = vmatprep.subr.bf16.mxu0 %v1353
        %1838 = vmatpush1.bf16.msra.mxu0 %v1352
        %1839 = vmatprep.subr.bf16.mxu0 %v1357
        %1840 = vmatpush1.bf16.msra.mxu0 %v1356
        %1841 = vmatprep.subr.bf16.mxu0 %v1361
        %1842 = vmatpush1.bf16.msra.mxu0 %v1360
        %1843 = vmatprep.subr.bf16.mxu0 %v1365
        %1844 = vmatpush1.bf16.msra.mxu0 %v1364
        %1845 = vmatprep.subr.bf16.mxu0 %v1369
        %1846 = vmatpush1.bf16.msra.mxu0 %v1368
        %1847 = vmatprep.subr.bf16.mxu0 %v1373
        %1848 = vmatpush1.bf16.msra.mxu0 %v1372
        %1849 = vmatprep.subr.bf16.mxu0 %v1377
        %1850 = vmatpush1.bf16.msra.mxu0 %v1376
        %1851 = vmatprep.subr.bf16.mxu0 %v1381
        %1852 = vmatpush1.bf16.msra.mxu0 %v1380
        %1853 = vmatprep.subr.bf16.mxu0 %v1385
        %1854 = vmatpush1.bf16.msra.mxu0 %v1384
        %1855 = vmatprep.subr.bf16.mxu0 %v1389
        %1856 = vmatpush1.bf16.msra.mxu0 %v1388
        %1857 = vmatprep.subr.bf16.mxu0 %v1393
        %1858 = vmatpush1.bf16.msra.mxu0 %v1392
        %1859 = vmatprep.subr.bf16.mxu0 %v1397
        %1860 = vmatpush1.bf16.msra.mxu0 %v1396
        %1861 = vmatprep.subr.bf16.mxu0 %v1401
        %1862 = vmatpush1.bf16.msra.mxu0 %v1400
        %1863 = vmatprep.mubr.bf16.mxu0 %v495
        %1864 = vmatmul.mubr.bf16.gmra.mrb[0].mxu0 %v494
        %v1865 = vpop.f32.mrb[0].mxu0
        %v1866 = vadd.f32 %v1823, %v1865
        %v1867 = vpop.f32.mrb[0].mxu0
        %v1868 = vadd.f32 %v1825, %v1867
        %v1869 = vpop.f32.mrb[0].mxu0
        %v1870 = vadd.f32 %v1827, %v1869
        %v1871 = vpop.f32.mrb[0].mxu0
        %v1872 = vadd.f32 %v1829, %v1871
        %1873 = vdwg.mxu0
        %1874 = vmatprep.subr.bf16.mxu0 %v1405
        %1875 = vmatpush1.bf16.msra.mxu0 %v1404
        %1876 = vmatprep.subr.bf16.mxu0 %v1409
        %1877 = vmatpush1.bf16.msra.mxu0 %v1408
        %1878 = vmatprep.subr.bf16.mxu0 %v1413
        %1879 = vmatpush1.bf16.msra.mxu0 %v1412
        %1880 = vmatprep.subr.bf16.mxu0 %v1417
        %1881 = vmatpush1.bf16.msra.mxu0 %v1416
        %1882 = vmatprep.subr.bf16.mxu0 %v1421
        %1883 = vmatpush1.bf16.msra.mxu0 %v1420
        %1884 = vmatprep.subr.bf16.mxu0 %v1425
        %1885 = vmatpush1.bf16.msra.mxu0 %v1424
        %1886 = vmatprep.subr.bf16.mxu0 %v1429
        %1887 = vmatpush1.bf16.msra.mxu0 %v1428
        %1888 = vmatprep.subr.bf16.mxu0 %v1433
        %1889 = vmatpush1.bf16.msra.mxu0 %v1432
        %1890 = vmatprep.subr.bf16.mxu0 %v1437
        %1891 = vmatpush1.bf16.msra.mxu0 %v1436
        %1892 = vmatprep.subr.bf16.mxu0 %v1441
        %1893 = vmatpush1.bf16.msra.mxu0 %v1440
        %1894 = vmatprep.subr.bf16.mxu0 %v1445
        %1895 = vmatpush1.bf16.msra.mxu0 %v1444
        %1896 = vmatprep.subr.bf16.mxu0 %v1449
        %1897 = vmatpush1.bf16.msra.mxu0 %v1448
        %1898 = vmatprep.subr.bf16.mxu0 %v1453
        %1899 = vmatpush1.bf16.msra.mxu0 %v1452
        %1900 = vmatprep.subr.bf16.mxu0 %v1457
        %1901 = vmatpush1.bf16.msra.mxu0 %v1456
        %1902 = vmatprep.subr.bf16.mxu0 %v1461
        %1903 = vmatpush1.bf16.msra.mxu0 %v1460
        %1904 = vmatprep.subr.bf16.mxu0 %v1465
        %1905 = vmatpush1.bf16.msra.mxu0 %v1464
        %1906 = vmatprep.mubr.bf16.mxu0 %v497
        %1907 = vmatmul.mubr.bf16.gmra.mrb[0].mxu0 %v496
        %v1908 = vpop.f32.mrb[0].mxu0
        %v1909 = vadd.f32 %v1866, %v1908
        %v1910 = vpop.f32.mrb[0].mxu0
        %v1911 = vadd.f32 %v1868, %v1910
        %v1912 = vpop.f32.mrb[0].mxu0
        %v1913 = vadd.f32 %v1870, %v1912
        %v1914 = vpop.f32.mrb[0].mxu0
        %v1915 = vadd.f32 %v1872, %v1914
        %1916 = vdwg.mxu0
        %1917 = vmatprep.subr.bf16.mxu0 %v1469
        %1918 = vmatpush1.bf16.msra.mxu0 %v1468
        %1919 = vmatprep.subr.bf16.mxu0 %v1473
        %1920 = vmatpush1.bf16.msra.mxu0 %v1472
        %1921 = vmatprep.subr.bf16.mxu0 %v1477
        %1922 = vmatpush1.bf16.msra.mxu0 %v1476
        %1923 = vmatprep.subr.bf16.mxu0 %v1481
        %1924 = vmatpush1.bf16.msra.mxu0 %v1480
        %1925 = vmatprep.subr.bf16.mxu0 %v1485
        %1926 = vmatpush1.bf16.msra.mxu0 %v1484
        %1927 = vmatprep.subr.bf16.mxu0 %v1489
        %1928 = vmatpush1.bf16.msra.mxu0 %v1488
        %1929 = vmatprep.subr.bf16.mxu0 %v1493
        %1930 = vmatpush1.bf16.msra.mxu0 %v1492
        %1931 = vmatprep.subr.bf16.mxu0 %v1497
        %1932 = vmatpush1.bf16.msra.mxu0 %v1496
        %1933 = vmatprep.subr.bf16.mxu0 %v1501
        %1934 = vmatpush1.bf16.msra.mxu0 %v1500
        %1935 = vmatprep.subr.bf16.mxu0 %v1505
        %1936 = vmatpush1.bf16.msra.mxu0 %v1504
        %1937 = vmatprep.subr.bf16.mxu0 %v1509
        %1938 = vmatpush1.bf16.msra.mxu0 %v1508
        %1939 = vmatprep.subr.bf16.mxu0 %v1513
        %1940 = vmatpush1.bf16.msra.mxu0 %v1512
        %1941 = vmatprep.subr.bf16.mxu0 %v1517
        %1942 = vmatpush1.bf16.msra.mxu0 %v1516
        %1943 = vmatprep.subr.bf16.mxu0 %v1521
        %1944 = vmatpush1.bf16.msra.mxu0 %v1520
        %1945 = vmatprep.subr.bf16.mxu0 %v1525
        %1946 = vmatpush1.bf16.msra.mxu0 %v1524
        %1947 = vmatprep.subr.bf16.mxu0 %v1529
        %1948 = vmatpush1.bf16.msra.mxu0 %v1528
        %1949 = vmatprep.mubr.bf16.mxu0 %v499
        %1950 = vmatmul.mubr.bf16.gmra.mrb[0].mxu0 %v498
        %v1951 = vpop.f32.mrb[0].mxu0
        %v1952 = vadd.f32 %v1909, %v1951
        %v1953 = vpop.f32.mrb[0].mxu0
        %v1954 = vadd.f32 %v1911, %v1953
        %v1955 = vpop.f32.mrb[0].mxu0
        %v1956 = vadd.f32 %v1913, %v1955
        %v1957 = vpop.f32.mrb[0].mxu0
        %v1958 = vadd.f32 %v1915, %v1957
        %1959 = vdwg.mxu0
        %1960 = vmatprep.subr.bf16.mxu0 %v1279
        %1961 = vmatpush1.bf16.msra.mxu0 %v1278
        %1962 = vmatprep.subr.bf16.mxu0 %v1283
        %1963 = vmatpush1.bf16.msra.mxu0 %v1282
        %1964 = vmatprep.subr.bf16.mxu0 %v1287
        %1965 = vmatpush1.bf16.msra.mxu0 %v1286
        %1966 = vmatprep.subr.bf16.mxu0 %v1291
        %1967 = vmatpush1.bf16.msra.mxu0 %v1290
        %1968 = vmatprep.subr.bf16.mxu0 %v1295
        %1969 = vmatpush1.bf16.msra.mxu0 %v1294
        %1970 = vmatprep.subr.bf16.mxu0 %v1299
        %1971 = vmatpush1.bf16.msra.mxu0 %v1298
        %1972 = vmatprep.subr.bf16.mxu0 %v1303
        %1973 = vmatpush1.bf16.msra.mxu0 %v1302
        %1974 = vmatprep.subr.bf16.mxu0 %v1307
        %1975 = vmatpush1.bf16.msra.mxu0 %v1306
        %1976 = vmatprep.subr.bf16.mxu0 %v1311
        %1977 = vmatpush1.bf16.msra.mxu0 %v1310
        %1978 = vmatprep.subr.bf16.mxu0 %v1315
        %1979 = vmatpush1.bf16.msra.mxu0 %v1314
        %1980 = vmatprep.subr.bf16.mxu0 %v1319
        %1981 = vmatpush1.bf16.msra.mxu0 %v1318
        %1982 = vmatprep.subr.bf16.mxu0 %v1323
        %1983 = vmatpush1.bf16.msra.mxu0 %v1322
        %1984 = vmatprep.subr.bf16.mxu0 %v1327
        %1985 = vmatpush1.bf16.msra.mxu0 %v1326
        %1986 = vmatprep.subr.bf16.mxu0 %v1331
        %1987 = vmatpush1.bf16.msra.mxu0 %v1330
        %1988 = vmatprep.subr.bf16.mxu0 %v1335
        %1989 = vmatpush1.bf16.msra.mxu0 %v1334
        %1990 = vmatprep.subr.bf16.mxu0 %v1339
        %1991 = vmatpush1.bf16.msra.mxu0 %v1338
        %1992 = vmatprep.mubr.bf16.mxu0 %v493
        %1993 = vmatmul.mubr.bf16.gmra.mrb[0].mxu0 %v492
        %v1994 = vpop.f32.mrb[0].mxu0
        %v1995 = vadd.f32 0.0, %v1994
        %v1996 = vpop.f32.mrb[0].mxu0
        %v1997 = vadd.f32 0.0, %v1996
        %v1998 = vpop.f32.mrb[0].mxu0
        %v1999 = vadd.f32 0.0, %v1998
        %v2000 = vpop.f32.mrb[0].mxu0
        %v2001 = vadd.f32 0.0, %v2000
        %2002 = vdwg.mxu0
        %2003 = vmatprep.subr.bf16.mxu0 %v1343
        %2004 = vmatpush1.bf16.msra.mxu0 %v1342
        %2005 = vmatprep.subr.bf16.mxu0 %v1347
        %2006 = vmatpush1.bf16.msra.mxu0 %v1346
        %2007 = vmatprep.subr.bf16.mxu0 %v1351
        %2008 = vmatpush1.bf16.msra.mxu0 %v1350
        %2009 = vmatprep.subr.bf16.mxu0 %v1355
        %2010 = vmatpush1.bf16.msra.mxu0 %v1354
        %2011 = vmatprep.subr.bf16.mxu0 %v1359
        %2012 = vmatpush1.bf16.msra.mxu0 %v1358
        %2013 = vmatprep.subr.bf16.mxu0 %v1363
        %2014 = vmatpush1.bf16.msra.mxu0 %v1362
        %2015 = vmatprep.subr.bf16.mxu0 %v1367
        %2016 = vmatpush1.bf16.msra.mxu0 %v1366
        %2017 = vmatprep.subr.bf16.mxu0 %v1371
        %2018 = vmatpush1.bf16.msra.mxu0 %v1370
        %2019 = vmatprep.subr.bf16.mxu0 %v1375
        %2020 = vmatpush1.bf16.msra.mxu0 %v1374
        %2021 = vmatprep.subr.bf16.mxu0 %v1379
        %2022 = vmatpush1.bf16.msra.mxu0 %v1378
        %2023 = vmatprep.subr.bf16.mxu0 %v1383
        %2024 = vmatpush1.bf16.msra.mxu0 %v1382
        %2025 = vmatprep.subr.bf16.mxu0 %v1387
        %2026 = vmatpush1.bf16.msra.mxu0 %v1386
        %2027 = vmatprep.subr.bf16.mxu0 %v1391
        %2028 = vmatpush1.bf16.msra.mxu0 %v1390
        %2029 = vmatprep.subr.bf16.mxu0 %v1395
        %2030 = vmatpush1.bf16.msra.mxu0 %v1394
        %2031 = vmatprep.subr.bf16.mxu0 %v1399
        %2032 = vmatpush1.bf16.msra.mxu0 %v1398
        %2033 = vmatprep.subr.bf16.mxu0 %v1403
        %2034 = vmatpush1.bf16.msra.mxu0 %v1402
        %2035 = vmatprep.mubr.bf16.mxu0 %v495
        %2036 = vmatmul.mubr.bf16.gmra.mrb[0].mxu0 %v494
        %v2037 = vpop.f32.mrb[0].mxu0
        %v2038 = vadd.f32 %v1995, %v2037
        %v2039 = vpop.f32.mrb[0].mxu0
        %v2040 = vadd.f32 %v1997, %v2039
        %v2041 = vpop.f32.mrb[0].mxu0
        %v2042 = vadd.f32 %v1999, %v2041
        %v2043 = vpop.f32.mrb[0].mxu0
        %v2044 = vadd.f32 %v2001, %v2043
        %2045 = vdwg.mxu0
        %2046 = vmatprep.subr.bf16.mxu0 %v1407
        %2047 = vmatpush1.bf16.msra.mxu0 %v1406
        %2048 = vmatprep.subr.bf16.mxu0 %v1411
        %2049 = vmatpush1.bf16.msra.mxu0 %v1410
        %2050 = vmatprep.subr.bf16.mxu0 %v1415
        %2051 = vmatpush1.bf16.msra.mxu0 %v1414
        %2052 = vmatprep.subr.bf16.mxu0 %v1419
        %2053 = vmatpush1.bf16.msra.mxu0 %v1418
        %2054 = vmatprep.subr.bf16.mxu0 %v1423
        %2055 = vmatpush1.bf16.msra.mxu0 %v1422
        %2056 = vmatprep.subr.bf16.mxu0 %v1427
        %2057 = vmatpush1.bf16.msra.mxu0 %v1426
        %2058 = vmatprep.subr.bf16.mxu0 %v1431
        %2059 = vmatpush1.bf16.msra.mxu0 %v1430
        %2060 = vmatprep.subr.bf16.mxu0 %v1435
        %2061 = vmatpush1.bf16.msra.mxu0 %v1434
        %2062 = vmatprep.subr.bf16.mxu0 %v1439
        %2063 = vmatpush1.bf16.msra.mxu0 %v1438
        %2064 = vmatprep.subr.bf16.mxu0 %v1443
        %2065 = vmatpush1.bf16.msra.mxu0 %v1442
        %2066 = vmatprep.subr.bf16.mxu0 %v1447
        %2067 = vmatpush1.bf16.msra.mxu0 %v1446
        %2068 = vmatprep.subr.bf16.mxu0 %v1451
        %2069 = vmatpush1.bf16.msra.mxu0 %v1450
        %2070 = vmatprep.subr.bf16.mxu0 %v1455
        %2071 = vmatpush1.bf16.msra.mxu0 %v1454
        %2072 = vmatprep.subr.bf16.mxu0 %v1459
        %2073 = vmatpush1.bf16.msra.mxu0 %v1458
        %2074 = vmatprep.subr.bf16.mxu0 %v1463
        %2075 = vmatpush1.bf16.msra.mxu0 %v1462
        %2076 = vmatprep.subr.bf16.mxu0 %v1467
        %2077 = vmatpush1.bf16.msra.mxu0 %v1466
        %2078 = vmatprep.mubr.bf16.mxu0 %v497
        %2079 = vmatmul.mubr.bf16.gmra.mrb[0].mxu0 %v496
        %v2080 = vpop.f32.mrb[0].mxu0
        %v2081 = vadd.f32 %v2038, %v2080
        %v2082 = vpop.f32.mrb[0].mxu0
        %v2083 = vadd.f32 %v2040, %v2082
        %v2084 = vpop.f32.mrb[0].mxu0
        %v2085 = vadd.f32 %v2042, %v2084
        %v2086 = vpop.f32.mrb[0].mxu0
        %v2087 = vadd.f32 %v2044, %v2086
        %2088 = vdwg.mxu0
        %2089 = vmatprep.subr.bf16.mxu0 %v1471
        %2090 = vmatpush1.bf16.msra.mxu0 %v1470
        %2091 = vmatprep.subr.bf16.mxu0 %v1475
        %2092 = vmatpush1.bf16.msra.mxu0 %v1474
        %2093 = vmatprep.subr.bf16.mxu0 %v1479
        %2094 = vmatpush1.bf16.msra.mxu0 %v1478
        %2095 = vmatprep.subr.bf16.mxu0 %v1483
        %2096 = vmatpush1.bf16.msra.mxu0 %v1482
        %2097 = vmatprep.subr.bf16.mxu0 %v1487
        %2098 = vmatpush1.bf16.msra.mxu0 %v1486
        %2099 = vmatprep.subr.bf16.mxu0 %v1491
        %2100 = vmatpush1.bf16.msra.mxu0 %v1490
        %2101 = vmatprep.subr.bf16.mxu0 %v1495
        %2102 = vmatpush1.bf16.msra.mxu0 %v1494
        %2103 = vmatprep.subr.bf16.mxu0 %v1499
        %2104 = vmatpush1.bf16.msra.mxu0 %v1498
        %2105 = vmatprep.subr.bf16.mxu0 %v1503
        %2106 = vmatpush1.bf16.msra.mxu0 %v1502
        %2107 = vmatprep.subr.bf16.mxu0 %v1507
        %2108 = vmatpush1.bf16.msra.mxu0 %v1506
        %2109 = vmatprep.subr.bf16.mxu0 %v1511
        %2110 = vmatpush1.bf16.msra.mxu0 %v1510
        %2111 = vmatprep.subr.bf16.mxu0 %v1515
        %2112 = vmatpush1.bf16.msra.mxu0 %v1514
        %2113 = vmatprep.subr.bf16.mxu0 %v1519
        %2114 = vmatpush1.bf16.msra.mxu0 %v1518
        %2115 = vmatprep.subr.bf16.mxu0 %v1523
        %2116 = vmatpush1.bf16.msra.mxu0 %v1522
        %2117 = vmatprep.subr.bf16.mxu0 %v1527
        %2118 = vmatpush1.bf16.msra.mxu0 %v1526
        %2119 = vmatprep.subr.bf16.mxu0 %v1531
        %2120 = vmatpush1.bf16.msra.mxu0 %v1530
        %2121 = vmatprep.mubr.bf16.mxu0 %v499
        %2122 = vmatmul.mubr.bf16.gmra.mrb[0].mxu0 %v498
        %v2123 = vpop.f32.mrb[0].mxu0
        %v2124 = vadd.f32 %v2081, %v2123
        %v2125 = vpop.f32.mrb[0].mxu0
        %v2126 = vadd.f32 %v2083, %v2125
        %v2127 = vpop.f32.mrb[0].mxu0
        %v2128 = vadd.f32 %v2085, %v2127
        %v2129 = vpop.f32.mrb[0].mxu0
        %v2130 = vadd.f32 %v2087, %v2129
        %2131 = vdwg.mxu0
        %v2132 = vpack.c.bf16 %v1956, %v1952
        %v2133 = vpack.c.bf16 %v1958, %v1954
        %v2134 = vpack.c.bf16 %v2128, %v2124
        %v2135 = vpack.c.bf16 %v2130, %v2126
        %v2140 = vunpack.c.l.b16 %v2132
        %v2141 = vunpack.c.l.b16 %v2133
        %v2142 = vunpack.c.l.b16 %v2134
        %v2143 = vunpack.c.l.b16 %v2135
        %v2144 = vunpack.c.h.b16 %v2132
        %v2145 = vunpack.c.h.b16 %v2133
        %v2146 = vunpack.c.h.b16 %v2134
        %v2147 = vunpack.c.h.b16 %v2135
        %v2148 = vpack.c.b16 %v2141, %v2140
        %v2149 = vpack.c.b16 %v2143, %v2142
        %v2150 = vpack.c.b16 %v2145, %v2144
        %v2151 = vpack.c.b16 %v2147, %v2146
        %2156 = vst [vmem:[%s199] sm:$0xff] %v2148
        %2157 = vst [vmem:[%s199 + $0x8] sm:$0xff] %v2149
        %2158 = vst [vmem:[%s199 + $0x10] sm:$0xff] %v2150
        %2159 = vst [vmem:[%s199 + $0x18] sm:$0xff] %v2151
        %s2160 = sand.u32 %s94, 1
        %s2161 = scalar_lea.sflag [#allocation4], %s2160
        %s2162 = sand.u32 %s94, 1
        %s2163 = smul.addr %s2162, 32
        %s2164 = scalar_lea.vmem [#allocation7], %s2163
        // Predicated region
        $region37: #{tpu_custom_call.1} parent=27 // pred_check
          %p2165 = pneg %p104
        $region38: #{tpu_custom_call.1} parent=27 // pred_check_branch
          %2167 = sbr.rel (%p2165) target = $region40
        $region39: #{tpu_custom_call.1} parent=27 // pred_region
          %s2168 = smul.u32 2, %s25
          %s2169 = smul.u32 4, %s24
          %s2171 = ssub.s32 512, 512
          %2172 = vsyncadd %s2161, %s2171
          %s2173 = smul.addr %s2168, 8
          %s2174 = sadd.s32 %s2169, %s2173
          %s2175 = smul.addr %s2174, 64
          %s2176 = scalar_lea.hbm %s2, %s2175
          %s2177 = sshll.u32 %s2164, 4
          %s2178 = int_to_ptr.vmem [resolvable:$true] %s2177
          %2183 = dma.vmem_to_hbm [thread:$0]  %s2178, 512, %s2176, %s2161, 256, 512, 16
        $region40: #{tpu_custom_call.1} parent=27 // pred_fallthru
          _
      $region28: #{tpu_custom_call.1} parent=5 // pred_fallthru
        _
      %p2184 = scmp.le.s32.totalorder 2, %s15
      // Predicated region
      $region41: #{tpu_custom_call.1} parent=5 // pred_check
        %p2185 = pneg %p2184
      $region42: #{tpu_custom_call.1} parent=5 // pred_check_branch
        %2187 = sbr.rel (%p2185) target = $region44
      $region43: #{tpu_custom_call.1} parent=5 // pred_region
        %s2188 = ssub.s32 %s15, 2
        // Predicated region
        $region45: #{tpu_custom_call.1} parent=43 // pred_check
          %p2189 = pneg %p110
        $region46: #{tpu_custom_call.1} parent=43 // pred_check_branch
          %2191 = sbr.rel (%p2189) target = $region48
        $region47: #{tpu_custom_call.1} parent=43 // pred_region
          %s2192 = sand.u32 %s95, 1
          %s2193 = scalar_lea.sflag [#allocation4], %s2192
          %s2194 = sand.u32 %s95, 1
          %s2195 = smul.addr %s2194, 32
          %s2196 = scalar_lea.vmem [#allocation7], %s2195
          %2197 = dma.done %s2193, 512
        $region48: #{tpu_custom_call.1} parent=43 // pred_fallthru
          _
      $region44: #{tpu_custom_call.1} parent=5 // pred_fallthru
        _
    $region6: #{tpu_custom_call.1} parent=1 // loop_footer
      %s19 = sadd.s32 1, %s15
    $region7: #{tpu_custom_call.1} parent=1 // loop_footer_branch
      %14 = sbr.rel target = $region3
    $region8: #{tpu_custom_call.1} parent=1 // loop_exit
      _
    %2198 = vsyncpa [#allocation3], 1
    %s2199 = scalar_lea.sflag [#allocation3], 1
    %2200 = vsyncpa %s2199, 1
    %2201 = vsyncpa [#allocation6], 1
    %s2202 = scalar_lea.sflag [#allocation6], 1
    %2203 = vsyncpa %s2202, 1
    %2204 = vsyncpa [#allocation4], 1
    %s2205 = scalar_lea.sflag [#allocation4], 1
    %2206 = vsyncpa %s2205, 1

</llo_original>
